<compile_context>
chip_gen: v6e
topology: v6e:2x2x1
jax: 0.10.0
libtpu: 0.0.40
codegen_flags: <defaults>
</compile_context>

<pallas_src>
import functools

import jax
import jax.numpy as jnp
import numpy as np
from jax.experimental import pallas as pl
from jax.experimental.pallas import tpu as pltpu


def kernel_init(kernel_num: int):
    """Deterministic mu / sigma init, identical to the PyTorch module."""
    mus = [1.0]
    bin_size = 2.0 / (kernel_num - 1)
    mus.append(1.0 - bin_size / 2.0)
    for i in range(1, kernel_num - 1):
        mus.append(mus[i] - bin_size)
    sigmas = [0.001] + [0.1] * (kernel_num - 1)
    return mus, sigmas


def _pick_tb(batch, lk, lv, d, itemsize, max_tb=None,
             vmem_budget_bytes=4 * 1024 * 1024):
    """Largest divisor of `batch` whose double-buffered input tiles fit the budget."""
    per_batch = (lk * d + lv * d) * itemsize + (lk + lv) * 4
    cap = max(1, vmem_budget_bytes // (2 * per_batch))
    if max_tb is not None:
        cap = min(cap, max_tb)
    tb = 1
    for cand in range(1, batch + 1):
        if batch % cand == 0 and cand <= cap:
            tb = cand
    return tb


def _kernel_matcher_kernel(k_e_ref, k_m_ref, v_e_ref, v_m_ref, out_ref, *,
                           mus, sigmas, kernel_num, out_lanes):
    """One grid step: TB batches of mask -> L2-normalize -> cosine matmul ->
    RBF kernel pooling, stored as a lane-dense (TB, 1, out_lanes) tile."""
    k_m = k_m_ref[...]                                      # (TB, Lk, 1) f32
    v_m = v_m_ref[...]                                      # (TB, Lv, 1) f32
    k_e = k_e_ref[...].astype(jnp.float32) * k_m            # (TB, Lk, D)
    v_e = v_e_ref[...].astype(jnp.float32) * v_m            # (TB, Lv, D)

    # F.normalize(p=2, dim=-1, eps=1e-10): x * rsqrt(max(sum x^2, eps^2))
    k_inv = jax.lax.rsqrt(jnp.maximum(jnp.sum(k_e * k_e, axis=2, keepdims=True), 1e-20))
    v_inv = jax.lax.rsqrt(jnp.maximum(jnp.sum(v_e * v_e, axis=2, keepdims=True), 1e-20))
    k_n = k_e * k_inv
    v_n = v_e * v_inv

    # Batched cosine similarity on the MXU: (TB, Lk, D) x (TB, Lv, D) -> (TB, Lk, Lv).
    sim = jnp.einsum("bkd,bvd->bkv", k_n, v_n,
                     preferred_element_type=jnp.float32,
                     precision=jax.lax.Precision.HIGHEST)
    # kv_mask multiply intentionally dropped (binary masks): masked rows/cols of
    # `sim` are already exactly zero, so sim * kv_mask == sim.

    def pool(rbf):                                          # (TB, Lk, Lv) -> (TB, 1, 1)
        pooled = jnp.sum(rbf, axis=2, keepdims=True)        # sum over Lv
        logp = jnp.log(jnp.maximum(pooled, 1e-10)) * 0.01
        return jnp.sum(logp, axis=1, keepdims=True)         # sum over Lk

    cols = [None] * kernel_num

    # Kernel 0 (mu = 1, sigma = 0.001): computed directly.
    d0 = sim - mus[0]
    cols[0] = pool(jnp.exp(d0 * d0 * (-0.5 / (sigmas[0] * sigmas[0]))))

    # Kernels 1..K-1 share sigma and have equally spaced mus (spacing = bin), so
    #   K_{i+1}(x) = K_i(x) * exp(-bin*x/sigma^2) * exp(bin*(mu_i+mu_{i+1})/(2 sigma^2))
    # One shared ratio `ratio` + one anchor exp per group replaces 20 EUP exps.
    sigma = sigmas[1]
    coef = -0.5 / (sigma * sigma)
    if kernel_num >= 3:
        bin_size = mus[1] - mus[2]
        ratio = jnp.exp(sim * (-bin_size / (sigma * sigma)))
        group = 5
    else:
        ratio = None
        group = 1

    i = 1
    while i < kernel_num:
        da = sim - mus[i]
        kern = jnp.exp(da * da * coef)                      # group anchor (direct exp)
        cols[i] = pool(kern)
        j = i + 1
        while j < min(kernel_num, i + group):
            c_j = float(np.exp((mus[j - 1] + mus[j]) * bin_size / (2.0 * sigma * sigma)))
            kern = (kern * ratio) * c_j                     # this order keeps |.| <= e^10
            cols[j] = pool(kern)
            j += 1
        i = j

    tb = k_m.shape[0]
    pad = out_lanes - kernel_num
    pieces = cols if pad == 0 else cols + [jnp.zeros((tb, 1, pad), jnp.float32)]
    out_ref[...] = jnp.concatenate(pieces, axis=2)          # lane-dense (TB,1,out_lanes)


def kernel_matcher(k_embed, k_mask, v_embed, v_mask, kernel_num: int = 21,
                   max_block_batch=None):
    B, Lk, D = k_embed.shape
    _, Lv, _ = v_embed.shape
    mus, sigmas = kernel_init(kernel_num)

    out_lanes = ((kernel_num + 127) // 128) * 128
    tb = _pick_tb(B, Lk, Lv, D, jnp.dtype(k_embed.dtype).itemsize,
                  max_tb=max_block_batch)

    # glue: the mask "unsqueeze(-1)" from the torch forward (tiny arrays).
    k_mask_col = k_mask.astype(jnp.float32)[:, :, None]     # (B, Lk, 1)
    v_mask_col = v_mask.astype(jnp.float32)[:, :, None]     # (B, Lv, 1)

    kern = functools.partial(_kernel_matcher_kernel,
                             mus=tuple(mus), sigmas=tuple(sigmas),
                             kernel_num=kernel_num, out_lanes=out_lanes)

    out = pl.pallas_call(
        kern,
        out_shape=jax.ShapeDtypeStruct((B, 1, out_lanes), jnp.float32),
        grid_spec=pltpu.PrefetchScalarGridSpec(
            num_scalar_prefetch=0,
            grid=(B // tb,),
            in_specs=[
                pl.BlockSpec((tb, Lk, D), lambda b: (b, 0, 0)),
                pl.BlockSpec((tb, Lk, 1), lambda b: (b, 0, 0)),
                pl.BlockSpec((tb, Lv, D), lambda b: (b, 0, 0)),
                pl.BlockSpec((tb, Lv, 1), lambda b: (b, 0, 0)),
            ],
            out_specs=pl.BlockSpec((tb, 1, out_lanes), lambda b: (b, 0, 0)),
        ),
        compiler_params=pltpu.CompilerParams(
            dimension_semantics=("parallel",)),   # batch blocks are fully independent
    )(k_embed, k_mask_col, v_embed, v_mask_col)
    return out[:, 0, :kernel_num]   # (B, kernel_num)


def kernel_matcher_ref(k_embed, k_mask, v_embed, v_mask, kernel_num: int = 21):
    """Pure-JAX reference mirroring the PyTorch forward exactly."""
    mus, sigmas = kernel_init(kernel_num)
    mus = jnp.asarray(mus, jnp.float32).reshape(1, 1, 1, kernel_num)
    sigmas = jnp.asarray(sigmas, jnp.float32).reshape(1, 1, 1, kernel_num)
    k_e = k_embed * k_mask[:, :, None]
    v_e = v_embed * v_mask[:, :, None]
    kv_mask = k_mask[:, :, None] * v_mask[:, None, :]
    k_n = k_e / jnp.maximum(jnp.sqrt(jnp.sum(k_e ** 2, -1, keepdims=True)), 1e-10)
    v_n = v_e / jnp.maximum(jnp.sqrt(jnp.sum(v_e ** 2, -1, keepdims=True)), 1e-10)
    inter = (jnp.einsum('bkd,bvd->bkv', k_n, v_n,
                        precision=jax.lax.Precision.HIGHEST) * kv_mask)[..., None]
    ko = jnp.exp(-((inter - mus) ** 2) / (sigmas ** 2) / 2.0)
    ko = jnp.log(jnp.clip(jnp.sum(ko, axis=2), 1e-10, None)) * 0.01
    return jnp.sum(ko, axis=1)


if __name__ == "__main__":
    key = jax.random.PRNGKey(0)
    B, Lk, Lv, D = 4, 8, 8, 32
    k1, k2, k3, k4 = jax.random.split(key, 4)
    k_embed = jax.random.normal(k1, (B, Lk, D), jnp.float32)
    v_embed = jax.random.normal(k2, (B, Lv, D), jnp.float32)
    k_mask = (jax.random.uniform(k3, (B, Lk)) > 0.25).astype(jnp.float32)
    v_mask = (jax.random.uniform(k4, (B, Lv)) > 0.25).astype(jnp.float32)

    # max_block_batch=2 -> TB=2, grid=(2,): exercises both the batched block and
    # multi-step grid paths even at this tiny size.
    out = kernel_matcher(k_embed, k_mask, v_embed, v_mask, max_block_batch=2)
    jax.block_until_ready(out)

    ref = kernel_matcher_ref(k_embed, k_mask, v_embed, v_mask)
    np.testing.assert_allclose(np.asarray(out), np.asarray(ref),
                               rtol=1e-4, atol=1e-4)
    print("KERNEL_OK")
</pallas_src>

<mosaic_0001>
module attributes {stable_mosaic.version = 11 : i64} {
  func.func @_kernel_matcher_kernel(%arg0: i32, %arg1: memref<2x8x32xf32, #tpu.memory_space<vmem>>, %arg2: memref<2x8x1xf32, #tpu.memory_space<vmem>>, %arg3: memref<2x8x32xf32, #tpu.memory_space<vmem>>, %arg4: memref<2x8x1xf32, #tpu.memory_space<vmem>>, %arg5: memref<2x1x128xf32, #tpu.memory_space<vmem>>) attributes {dimension_semantics = [#tpu.dimension_semantics<parallel>], iteration_bounds = array<i64: 2>, scalar_prefetch = 0 : i64, scratch_operands = 0 : i64, tpu.core_type = #tpu.core_type<tc>, window_params = [{transform_indices = @transform_0, window_bounds = array<i64: 2, 8, 32>}, {transform_indices = @transform_1, window_bounds = array<i64: 2, 8, 1>}, {transform_indices = @transform_2, window_bounds = array<i64: 2, 8, 32>}, {transform_indices = @transform_3, window_bounds = array<i64: 2, 8, 1>}, {transform_indices = @transform_4, window_bounds = array<i64: 2, 1, 128>}]} {
    %c0 = arith.constant 0 : index
    %c0_0 = arith.constant 0 : index
    %c0_1 = arith.constant 0 : index
    %0 = vector.load %arg2[%c0, %c0_0, %c0_1] : memref<2x8x1xf32, #tpu.memory_space<vmem>>, vector<2x8x1xf32>
    %c0_2 = arith.constant 0 : index
    %c0_3 = arith.constant 0 : index
    %c0_4 = arith.constant 0 : index
    %1 = vector.load %arg4[%c0_2, %c0_3, %c0_4] : memref<2x8x1xf32, #tpu.memory_space<vmem>>, vector<2x8x1xf32>
    %c0_5 = arith.constant 0 : index
    %c0_6 = arith.constant 0 : index
    %c0_7 = arith.constant 0 : index
    %2 = vector.load %arg1[%c0_5, %c0_6, %c0_7] : memref<2x8x32xf32, #tpu.memory_space<vmem>>, vector<2x8x32xf32>
    %3 = vector.broadcast %0 : vector<2x8x1xf32> to vector<2x8x32xf32>
    %4 = arith.mulf %2, %3 : vector<2x8x32xf32>
    %c0_8 = arith.constant 0 : index
    %c0_9 = arith.constant 0 : index
    %c0_10 = arith.constant 0 : index
    %5 = vector.load %arg3[%c0_8, %c0_9, %c0_10] : memref<2x8x32xf32, #tpu.memory_space<vmem>>, vector<2x8x32xf32>
    %6 = vector.broadcast %1 : vector<2x8x1xf32> to vector<2x8x32xf32>
    %7 = arith.mulf %5, %6 : vector<2x8x32xf32>
    %8 = arith.mulf %4, %4 : vector<2x8x32xf32>
    %cst = arith.constant dense<0.000000e+00> : vector<2x8xf32>
    %9 = vector.multi_reduction <add>, %8, %cst [2] : vector<2x8x32xf32> to vector<2x8xf32>
    %10 = vector.shape_cast %9 : vector<2x8xf32> to vector<2x8x1xf32>
    %cst_11 = arith.constant 9.99999968E-21 : f32
    %11 = vector.broadcast %cst_11 : f32 to vector<2x8x1xf32>
    %12 = arith.maximumf %10, %11 : vector<2x8x1xf32>
    %13 = math.rsqrt %12 : vector<2x8x1xf32>
    %14 = arith.mulf %7, %7 : vector<2x8x32xf32>
    %cst_12 = arith.constant dense<0.000000e+00> : vector<2x8xf32>
    %15 = vector.multi_reduction <add>, %14, %cst_12 [2] : vector<2x8x32xf32> to vector<2x8xf32>
    %16 = vector.shape_cast %15 : vector<2x8xf32> to vector<2x8x1xf32>
    %cst_13 = arith.constant 9.99999968E-21 : f32
    %17 = vector.broadcast %cst_13 : f32 to vector<2x8x1xf32>
    %18 = arith.maximumf %16, %17 : vector<2x8x1xf32>
    %19 = math.rsqrt %18 : vector<2x8x1xf32>
    %20 = vector.broadcast %13 : vector<2x8x1xf32> to vector<2x8x32xf32>
    %21 = arith.mulf %4, %20 : vector<2x8x32xf32>
    %22 = vector.broadcast %19 : vector<2x8x1xf32> to vector<2x8x32xf32>
    %23 = arith.mulf %7, %22 : vector<2x8x32xf32>
    "tpu.trace_start"() <{level = 10 : i32, message = "bkd,bvd->bkv"}> : () -> ()
    %cst_14 = arith.constant dense<0.000000e+00> : vector<2x8x8xf32>
    %24 = tpu.matmul %21, %23, %cst_14 {dimension_numbers = #tpu.dot_dimension_numbers<[2], [2], [1], [1], [0, 0, 0, 1, 1, 1], [0], [0]>, precision = #tpu.contract_precision<fp32>} : vector<2x8x32xf32>, vector<2x8x32xf32>, vector<2x8x8xf32> -> vector<2x8x8xf32>
    "tpu.trace_stop"() : () -> ()
    %cst_15 = arith.constant 1.000000e+00 : f32
    %25 = vector.broadcast %cst_15 : f32 to vector<2x8x8xf32>
    %26 = arith.subf %24, %25 : vector<2x8x8xf32>
    %27 = arith.mulf %26, %26 : vector<2x8x8xf32>
    %cst_16 = arith.constant -5.000000e+05 : f32
    %28 = vector.broadcast %cst_16 : f32 to vector<2x8x8xf32>
    %29 = arith.mulf %27, %28 : vector<2x8x8xf32>
    %30 = math.exp %29 : vector<2x8x8xf32>
    %cst_17 = arith.constant dense<0.000000e+00> : vector<2x8xf32>
    %31 = vector.multi_reduction <add>, %30, %cst_17 [2] : vector<2x8x8xf32> to vector<2x8xf32>
    %32 = vector.shape_cast %31 : vector<2x8xf32> to vector<2x8x1xf32>
    %cst_18 = arith.constant 1.000000e-10 : f32
    %33 = vector.broadcast %cst_18 : f32 to vector<2x8x1xf32>
    %34 = arith.maximumf %32, %33 : vector<2x8x1xf32>
    %35 = math.log %34 : vector<2x8x1xf32>
    %cst_19 = arith.constant 0.00999999977 : f32
    %36 = vector.broadcast %cst_19 : f32 to vector<2x8x1xf32>
    %37 = arith.mulf %35, %36 : vector<2x8x1xf32>
    %cst_20 = arith.constant dense<0.000000e+00> : vector<2x1xf32>
    %38 = vector.multi_reduction <add>, %37, %cst_20 [1] : vector<2x8x1xf32> to vector<2x1xf32>
    %39 = vector.shape_cast %38 : vector<2x1xf32> to vector<2x1x1xf32>
    %cst_21 = arith.constant -1.000000e+01 : f32
    %40 = vector.broadcast %cst_21 : f32 to vector<2x8x8xf32>
    %41 = arith.mulf %24, %40 : vector<2x8x8xf32>
    %42 = math.exp %41 : vector<2x8x8xf32>
    %cst_22 = arith.constant 0.949999988 : f32
    %43 = vector.broadcast %cst_22 : f32 to vector<2x8x8xf32>
    %44 = arith.subf %24, %43 : vector<2x8x8xf32>
    %45 = arith.mulf %44, %44 : vector<2x8x8xf32>
    %cst_23 = arith.constant -5.000000e+01 : f32
    %46 = vector.broadcast %cst_23 : f32 to vector<2x8x8xf32>
    %47 = arith.mulf %45, %46 : vector<2x8x8xf32>
    %48 = math.exp %47 : vector<2x8x8xf32>
    %cst_24 = arith.constant dense<0.000000e+00> : vector<2x8xf32>
    %49 = vector.multi_reduction <add>, %48, %cst_24 [2] : vector<2x8x8xf32> to vector<2x8xf32>
    %50 = vector.shape_cast %49 : vector<2x8xf32> to vector<2x8x1xf32>
    %cst_25 = arith.constant 1.000000e-10 : f32
    %51 = vector.broadcast %cst_25 : f32 to vector<2x8x1xf32>
    %52 = arith.maximumf %50, %51 : vector<2x8x1xf32>
    %53 = math.log %52 : vector<2x8x1xf32>
    %cst_26 = arith.constant 0.00999999977 : f32
    %54 = vector.broadcast %cst_26 : f32 to vector<2x8x1xf32>
    %55 = arith.mulf %53, %54 : vector<2x8x1xf32>
    %cst_27 = arith.constant dense<0.000000e+00> : vector<2x1xf32>
    %56 = vector.multi_reduction <add>, %55, %cst_27 [1] : vector<2x8x1xf32> to vector<2x1xf32>
    %57 = vector.shape_cast %56 : vector<2x1xf32> to vector<2x1x1xf32>
    %58 = arith.mulf %48, %42 : vector<2x8x8xf32>
    %cst_28 = arith.constant 8103.08398 : f32
    %59 = vector.broadcast %cst_28 : f32 to vector<2x8x8xf32>
    %60 = arith.mulf %58, %59 : vector<2x8x8xf32>
    %cst_29 = arith.constant dense<0.000000e+00> : vector<2x8xf32>
    %61 = vector.multi_reduction <add>, %60, %cst_29 [2] : vector<2x8x8xf32> to vector<2x8xf32>
    %62 = vector.shape_cast %61 : vector<2x8xf32> to vector<2x8x1xf32>
    %cst_30 = arith.constant 1.000000e-10 : f32
    %63 = vector.broadcast %cst_30 : f32 to vector<2x8x1xf32>
    %64 = arith.maximumf %62, %63 : vector<2x8x1xf32>
    %65 = math.log %64 : vector<2x8x1xf32>
    %cst_31 = arith.constant 0.00999999977 : f32
    %66 = vector.broadcast %cst_31 : f32 to vector<2x8x1xf32>
    %67 = arith.mulf %65, %66 : vector<2x8x1xf32>
    %cst_32 = arith.constant dense<0.000000e+00> : vector<2x1xf32>
    %68 = vector.multi_reduction <add>, %67, %cst_32 [1] : vector<2x8x1xf32> to vector<2x1xf32>
    %69 = vector.shape_cast %68 : vector<2x1xf32> to vector<2x1x1xf32>
    %70 = arith.mulf %60, %42 : vector<2x8x8xf32>
    %cst_33 = arith.constant 2980.95801 : f32
    %71 = vector.broadcast %cst_33 : f32 to vector<2x8x8xf32>
    %72 = arith.mulf %70, %71 : vector<2x8x8xf32>
    %cst_34 = arith.constant dense<0.000000e+00> : vector<2x8xf32>
    %73 = vector.multi_reduction <add>, %72, %cst_34 [2] : vector<2x8x8xf32> to vector<2x8xf32>
    %74 = vector.shape_cast %73 : vector<2x8xf32> to vector<2x8x1xf32>
    %cst_35 = arith.constant 1.000000e-10 : f32
    %75 = vector.broadcast %cst_35 : f32 to vector<2x8x1xf32>
    %76 = arith.maximumf %74, %75 : vector<2x8x1xf32>
    %77 = math.log %76 : vector<2x8x1xf32>
    %cst_36 = arith.constant 0.00999999977 : f32
    %78 = vector.broadcast %cst_36 : f32 to vector<2x8x1xf32>
    %79 = arith.mulf %77, %78 : vector<2x8x1xf32>
    %cst_37 = arith.constant dense<0.000000e+00> : vector<2x1xf32>
    %80 = vector.multi_reduction <add>, %79, %cst_37 [1] : vector<2x8x1xf32> to vector<2x1xf32>
    %81 = vector.shape_cast %80 : vector<2x1xf32> to vector<2x1x1xf32>
    %82 = arith.mulf %72, %42 : vector<2x8x8xf32>
    %cst_38 = arith.constant 1096.63318 : f32
    %83 = vector.broadcast %cst_38 : f32 to vector<2x8x8xf32>
    %84 = arith.mulf %82, %83 : vector<2x8x8xf32>
    %cst_39 = arith.constant dense<0.000000e+00> : vector<2x8xf32>
    %85 = vector.multi_reduction <add>, %84, %cst_39 [2] : vector<2x8x8xf32> to vector<2x8xf32>
    %86 = vector.shape_cast %85 : vector<2x8xf32> to vector<2x8x1xf32>
    %cst_40 = arith.constant 1.000000e-10 : f32
    %87 = vector.broadcast %cst_40 : f32 to vector<2x8x1xf32>
    %88 = arith.maximumf %86, %87 : vector<2x8x1xf32>
    %89 = math.log %88 : vector<2x8x1xf32>
    %cst_41 = arith.constant 0.00999999977 : f32
    %90 = vector.broadcast %cst_41 : f32 to vector<2x8x1xf32>
    %91 = arith.mulf %89, %90 : vector<2x8x1xf32>
    %cst_42 = arith.constant dense<0.000000e+00> : vector<2x1xf32>
    %92 = vector.multi_reduction <add>, %91, %cst_42 [1] : vector<2x8x1xf32> to vector<2x1xf32>
    %93 = vector.shape_cast %92 : vector<2x1xf32> to vector<2x1x1xf32>
    %94 = arith.mulf %84, %42 : vector<2x8x8xf32>
    %cst_43 = arith.constant 403.428802 : f32
    %95 = vector.broadcast %cst_43 : f32 to vector<2x8x8xf32>
    %96 = arith.mulf %94, %95 : vector<2x8x8xf32>
    %cst_44 = arith.constant dense<0.000000e+00> : vector<2x8xf32>
    %97 = vector.multi_reduction <add>, %96, %cst_44 [2] : vector<2x8x8xf32> to vector<2x8xf32>
    %98 = vector.shape_cast %97 : vector<2x8xf32> to vector<2x8x1xf32>
    %cst_45 = arith.constant 1.000000e-10 : f32
    %99 = vector.broadcast %cst_45 : f32 to vector<2x8x1xf32>
    %100 = arith.maximumf %98, %99 : vector<2x8x1xf32>
    %101 = math.log %100 : vector<2x8x1xf32>
    %cst_46 = arith.constant 0.00999999977 : f32
    %102 = vector.broadcast %cst_46 : f32 to vector<2x8x1xf32>
    %103 = arith.mulf %101, %102 : vector<2x8x1xf32>
    %cst_47 = arith.constant dense<0.000000e+00> : vector<2x1xf32>
    %104 = vector.multi_reduction <add>, %103, %cst_47 [1] : vector<2x8x1xf32> to vector<2x1xf32>
    %105 = vector.shape_cast %104 : vector<2x1xf32> to vector<2x1x1xf32>
    %cst_48 = arith.constant 4.500000e-01 : f32
    %106 = vector.broadcast %cst_48 : f32 to vector<2x8x8xf32>
    %107 = arith.subf %24, %106 : vector<2x8x8xf32>
    %108 = arith.mulf %107, %107 : vector<2x8x8xf32>
    %cst_49 = arith.constant -5.000000e+01 : f32
    %109 = vector.broadcast %cst_49 : f32 to vector<2x8x8xf32>
    %110 = arith.mulf %108, %109 : vector<2x8x8xf32>
    %111 = math.exp %110 : vector<2x8x8xf32>
    %cst_50 = arith.constant dense<0.000000e+00> : vector<2x8xf32>
    %112 = vector.multi_reduction <add>, %111, %cst_50 [2] : vector<2x8x8xf32> to vector<2x8xf32>
    %113 = vector.shape_cast %112 : vector<2x8xf32> to vector<2x8x1xf32>
    %cst_51 = arith.constant 1.000000e-10 : f32
    %114 = vector.broadcast %cst_51 : f32 to vector<2x8x1xf32>
    %115 = arith.maximumf %113, %114 : vector<2x8x1xf32>
    %116 = math.log %115 : vector<2x8x1xf32>
    %cst_52 = arith.constant 0.00999999977 : f32
    %117 = vector.broadcast %cst_52 : f32 to vector<2x8x1xf32>
    %118 = arith.mulf %116, %117 : vector<2x8x1xf32>
    %cst_53 = arith.constant dense<0.000000e+00> : vector<2x1xf32>
    %119 = vector.multi_reduction <add>, %118, %cst_53 [1] : vector<2x8x1xf32> to vector<2x1xf32>
    %120 = vector.shape_cast %119 : vector<2x1xf32> to vector<2x1x1xf32>
    %121 = arith.mulf %111, %42 : vector<2x8x8xf32>
    %cst_54 = arith.constant 54.5981483 : f32
    %122 = vector.broadcast %cst_54 : f32 to vector<2x8x8xf32>
    %123 = arith.mulf %121, %122 : vector<2x8x8xf32>
    %cst_55 = arith.constant dense<0.000000e+00> : vector<2x8xf32>
    %124 = vector.multi_reduction <add>, %123, %cst_55 [2] : vector<2x8x8xf32> to vector<2x8xf32>
    %125 = vector.shape_cast %124 : vector<2x8xf32> to vector<2x8x1xf32>
    %cst_56 = arith.constant 1.000000e-10 : f32
    %126 = vector.broadcast %cst_56 : f32 to vector<2x8x1xf32>
    %127 = arith.maximumf %125, %126 : vector<2x8x1xf32>
    %128 = math.log %127 : vector<2x8x1xf32>
    %cst_57 = arith.constant 0.00999999977 : f32
    %129 = vector.broadcast %cst_57 : f32 to vector<2x8x1xf32>
    %130 = arith.mulf %128, %129 : vector<2x8x1xf32>
    %cst_58 = arith.constant dense<0.000000e+00> : vector<2x1xf32>
    %131 = vector.multi_reduction <add>, %130, %cst_58 [1] : vector<2x8x1xf32> to vector<2x1xf32>
    %132 = vector.shape_cast %131 : vector<2x1xf32> to vector<2x1x1xf32>
    %133 = arith.mulf %123, %42 : vector<2x8x8xf32>
    %cst_59 = arith.constant 20.085537 : f32
    %134 = vector.broadcast %cst_59 : f32 to vector<2x8x8xf32>
    %135 = arith.mulf %133, %134 : vector<2x8x8xf32>
    %cst_60 = arith.constant dense<0.000000e+00> : vector<2x8xf32>
    %136 = vector.multi_reduction <add>, %135, %cst_60 [2] : vector<2x8x8xf32> to vector<2x8xf32>
    %137 = vector.shape_cast %136 : vector<2x8xf32> to vector<2x8x1xf32>
    %cst_61 = arith.constant 1.000000e-10 : f32
    %138 = vector.broadcast %cst_61 : f32 to vector<2x8x1xf32>
    %139 = arith.maximumf %137, %138 : vector<2x8x1xf32>
    %140 = math.log %139 : vector<2x8x1xf32>
    %cst_62 = arith.constant 0.00999999977 : f32
    %141 = vector.broadcast %cst_62 : f32 to vector<2x8x1xf32>
    %142 = arith.mulf %140, %141 : vector<2x8x1xf32>
    %cst_63 = arith.constant dense<0.000000e+00> : vector<2x1xf32>
    %143 = vector.multi_reduction <add>, %142, %cst_63 [1] : vector<2x8x1xf32> to vector<2x1xf32>
    %144 = vector.shape_cast %143 : vector<2x1xf32> to vector<2x1x1xf32>
    %145 = arith.mulf %135, %42 : vector<2x8x8xf32>
    %cst_64 = arith.constant 7.3890562 : f32
    %146 = vector.broadcast %cst_64 : f32 to vector<2x8x8xf32>
    %147 = arith.mulf %145, %146 : vector<2x8x8xf32>
    %cst_65 = arith.constant dense<0.000000e+00> : vector<2x8xf32>
    %148 = vector.multi_reduction <add>, %147, %cst_65 [2] : vector<2x8x8xf32> to vector<2x8xf32>
    %149 = vector.shape_cast %148 : vector<2x8xf32> to vector<2x8x1xf32>
    %cst_66 = arith.constant 1.000000e-10 : f32
    %150 = vector.broadcast %cst_66 : f32 to vector<2x8x1xf32>
    %151 = arith.maximumf %149, %150 : vector<2x8x1xf32>
    %152 = math.log %151 : vector<2x8x1xf32>
    %cst_67 = arith.constant 0.00999999977 : f32
    %153 = vector.broadcast %cst_67 : f32 to vector<2x8x1xf32>
    %154 = arith.mulf %152, %153 : vector<2x8x1xf32>
    %cst_68 = arith.constant dense<0.000000e+00> : vector<2x1xf32>
    %155 = vector.multi_reduction <add>, %154, %cst_68 [1] : vector<2x8x1xf32> to vector<2x1xf32>
    %156 = vector.shape_cast %155 : vector<2x1xf32> to vector<2x1x1xf32>
    %157 = arith.mulf %147, %42 : vector<2x8x8xf32>
    %cst_69 = arith.constant 2.71828175 : f32
    %158 = vector.broadcast %cst_69 : f32 to vector<2x8x8xf32>
    %159 = arith.mulf %157, %158 : vector<2x8x8xf32>
    %cst_70 = arith.constant dense<0.000000e+00> : vector<2x8xf32>
    %160 = vector.multi_reduction <add>, %159, %cst_70 [2] : vector<2x8x8xf32> to vector<2x8xf32>
    %161 = vector.shape_cast %160 : vector<2x8xf32> to vector<2x8x1xf32>
    %cst_71 = arith.constant 1.000000e-10 : f32
    %162 = vector.broadcast %cst_71 : f32 to vector<2x8x1xf32>
    %163 = arith.maximumf %161, %162 : vector<2x8x1xf32>
    %164 = math.log %163 : vector<2x8x1xf32>
    %cst_72 = arith.constant 0.00999999977 : f32
    %165 = vector.broadcast %cst_72 : f32 to vector<2x8x1xf32>
    %166 = arith.mulf %164, %165 : vector<2x8x1xf32>
    %cst_73 = arith.constant dense<0.000000e+00> : vector<2x1xf32>
    %167 = vector.multi_reduction <add>, %166, %cst_73 [1] : vector<2x8x1xf32> to vector<2x1xf32>
    %168 = vector.shape_cast %167 : vector<2x1xf32> to vector<2x1x1xf32>
    %cst_74 = arith.constant -5.000000e-02 : f32
    %169 = vector.broadcast %cst_74 : f32 to vector<2x8x8xf32>
    %170 = arith.subf %24, %169 : vector<2x8x8xf32>
    %171 = arith.mulf %170, %170 : vector<2x8x8xf32>
    %cst_75 = arith.constant -5.000000e+01 : f32
    %172 = vector.broadcast %cst_75 : f32 to vector<2x8x8xf32>
    %173 = arith.mulf %171, %172 : vector<2x8x8xf32>
    %174 = math.exp %173 : vector<2x8x8xf32>
    %cst_76 = arith.constant dense<0.000000e+00> : vector<2x8xf32>
    %175 = vector.multi_reduction <add>, %174, %cst_76 [2] : vector<2x8x8xf32> to vector<2x8xf32>
    %176 = vector.shape_cast %175 : vector<2x8xf32> to vector<2x8x1xf32>
    %cst_77 = arith.constant 1.000000e-10 : f32
    %177 = vector.broadcast %cst_77 : f32 to vector<2x8x1xf32>
    %178 = arith.maximumf %176, %177 : vector<2x8x1xf32>
    %179 = math.log %178 : vector<2x8x1xf32>
    %cst_78 = arith.constant 0.00999999977 : f32
    %180 = vector.broadcast %cst_78 : f32 to vector<2x8x1xf32>
    %181 = arith.mulf %179, %180 : vector<2x8x1xf32>
    %cst_79 = arith.constant dense<0.000000e+00> : vector<2x1xf32>
    %182 = vector.multi_reduction <add>, %181, %cst_79 [1] : vector<2x8x1xf32> to vector<2x1xf32>
    %183 = vector.shape_cast %182 : vector<2x1xf32> to vector<2x1x1xf32>
    %184 = arith.mulf %174, %42 : vector<2x8x8xf32>
    %cst_80 = arith.constant 0.36787945 : f32
    %185 = vector.broadcast %cst_80 : f32 to vector<2x8x8xf32>
    %186 = arith.mulf %184, %185 : vector<2x8x8xf32>
    %cst_81 = arith.constant dense<0.000000e+00> : vector<2x8xf32>
    %187 = vector.multi_reduction <add>, %186, %cst_81 [2] : vector<2x8x8xf32> to vector<2x8xf32>
    %188 = vector.shape_cast %187 : vector<2x8xf32> to vector<2x8x1xf32>
    %cst_82 = arith.constant 1.000000e-10 : f32
    %189 = vector.broadcast %cst_82 : f32 to vector<2x8x1xf32>
    %190 = arith.maximumf %188, %189 : vector<2x8x1xf32>
    %191 = math.log %190 : vector<2x8x1xf32>
    %cst_83 = arith.constant 0.00999999977 : f32
    %192 = vector.broadcast %cst_83 : f32 to vector<2x8x1xf32>
    %193 = arith.mulf %191, %192 : vector<2x8x1xf32>
    %cst_84 = arith.constant dense<0.000000e+00> : vector<2x1xf32>
    %194 = vector.multi_reduction <add>, %193, %cst_84 [1] : vector<2x8x1xf32> to vector<2x1xf32>
    %195 = vector.shape_cast %194 : vector<2x1xf32> to vector<2x1x1xf32>
    %196 = arith.mulf %186, %42 : vector<2x8x8xf32>
    %cst_85 = arith.constant 0.135335281 : f32
    %197 = vector.broadcast %cst_85 : f32 to vector<2x8x8xf32>
    %198 = arith.mulf %196, %197 : vector<2x8x8xf32>
    %cst_86 = arith.constant dense<0.000000e+00> : vector<2x8xf32>
    %199 = vector.multi_reduction <add>, %198, %cst_86 [2] : vector<2x8x8xf32> to vector<2x8xf32>
    %200 = vector.shape_cast %199 : vector<2x8xf32> to vector<2x8x1xf32>
    %cst_87 = arith.constant 1.000000e-10 : f32
    %201 = vector.broadcast %cst_87 : f32 to vector<2x8x1xf32>
    %202 = arith.maximumf %200, %201 : vector<2x8x1xf32>
    %203 = math.log %202 : vector<2x8x1xf32>
    %cst_88 = arith.constant 0.00999999977 : f32
    %204 = vector.broadcast %cst_88 : f32 to vector<2x8x1xf32>
    %205 = arith.mulf %203, %204 : vector<2x8x1xf32>
    %cst_89 = arith.constant dense<0.000000e+00> : vector<2x1xf32>
    %206 = vector.multi_reduction <add>, %205, %cst_89 [1] : vector<2x8x1xf32> to vector<2x1xf32>
    %207 = vector.shape_cast %206 : vector<2x1xf32> to vector<2x1x1xf32>
    %208 = arith.mulf %198, %42 : vector<2x8x8xf32>
    %cst_90 = arith.constant 0.0497870669 : f32
    %209 = vector.broadcast %cst_90 : f32 to vector<2x8x8xf32>
    %210 = arith.mulf %208, %209 : vector<2x8x8xf32>
    %cst_91 = arith.constant dense<0.000000e+00> : vector<2x8xf32>
    %211 = vector.multi_reduction <add>, %210, %cst_91 [2] : vector<2x8x8xf32> to vector<2x8xf32>
    %212 = vector.shape_cast %211 : vector<2x8xf32> to vector<2x8x1xf32>
    %cst_92 = arith.constant 1.000000e-10 : f32
    %213 = vector.broadcast %cst_92 : f32 to vector<2x8x1xf32>
    %214 = arith.maximumf %212, %213 : vector<2x8x1xf32>
    %215 = math.log %214 : vector<2x8x1xf32>
    %cst_93 = arith.constant 0.00999999977 : f32
    %216 = vector.broadcast %cst_93 : f32 to vector<2x8x1xf32>
    %217 = arith.mulf %215, %216 : vector<2x8x1xf32>
    %cst_94 = arith.constant dense<0.000000e+00> : vector<2x1xf32>
    %218 = vector.multi_reduction <add>, %217, %cst_94 [1] : vector<2x8x1xf32> to vector<2x1xf32>
    %219 = vector.shape_cast %218 : vector<2x1xf32> to vector<2x1x1xf32>
    %220 = arith.mulf %210, %42 : vector<2x8x8xf32>
    %cst_95 = arith.constant 0.0183156393 : f32
    %221 = vector.broadcast %cst_95 : f32 to vector<2x8x8xf32>
    %222 = arith.mulf %220, %221 : vector<2x8x8xf32>
    %cst_96 = arith.constant dense<0.000000e+00> : vector<2x8xf32>
    %223 = vector.multi_reduction <add>, %222, %cst_96 [2] : vector<2x8x8xf32> to vector<2x8xf32>
    %224 = vector.shape_cast %223 : vector<2x8xf32> to vector<2x8x1xf32>
    %cst_97 = arith.constant 1.000000e-10 : f32
    %225 = vector.broadcast %cst_97 : f32 to vector<2x8x1xf32>
    %226 = arith.maximumf %224, %225 : vector<2x8x1xf32>
    %227 = math.log %226 : vector<2x8x1xf32>
    %cst_98 = arith.constant 0.00999999977 : f32
    %228 = vector.broadcast %cst_98 : f32 to vector<2x8x1xf32>
    %229 = arith.mulf %227, %228 : vector<2x8x1xf32>
    %cst_99 = arith.constant dense<0.000000e+00> : vector<2x1xf32>
    %230 = vector.multi_reduction <add>, %229, %cst_99 [1] : vector<2x8x1xf32> to vector<2x1xf32>
    %231 = vector.shape_cast %230 : vector<2x1xf32> to vector<2x1x1xf32>
    %cst_100 = arith.constant -5.500000e-01 : f32
    %232 = vector.broadcast %cst_100 : f32 to vector<2x8x8xf32>
    %233 = arith.subf %24, %232 : vector<2x8x8xf32>
    %234 = arith.mulf %233, %233 : vector<2x8x8xf32>
    %cst_101 = arith.constant -5.000000e+01 : f32
    %235 = vector.broadcast %cst_101 : f32 to vector<2x8x8xf32>
    %236 = arith.mulf %234, %235 : vector<2x8x8xf32>
    %237 = math.exp %236 : vector<2x8x8xf32>
    %cst_102 = arith.constant dense<0.000000e+00> : vector<2x8xf32>
    %238 = vector.multi_reduction <add>, %237, %cst_102 [2] : vector<2x8x8xf32> to vector<2x8xf32>
    %239 = vector.shape_cast %238 : vector<2x8xf32> to vector<2x8x1xf32>
    %cst_103 = arith.constant 1.000000e-10 : f32
    %240 = vector.broadcast %cst_103 : f32 to vector<2x8x1xf32>
    %241 = arith.maximumf %239, %240 : vector<2x8x1xf32>
    %242 = math.log %241 : vector<2x8x1xf32>
    %cst_104 = arith.constant 0.00999999977 : f32
    %243 = vector.broadcast %cst_104 : f32 to vector<2x8x1xf32>
    %244 = arith.mulf %242, %243 : vector<2x8x1xf32>
    %cst_105 = arith.constant dense<0.000000e+00> : vector<2x1xf32>
    %245 = vector.multi_reduction <add>, %244, %cst_105 [1] : vector<2x8x1xf32> to vector<2x1xf32>
    %246 = vector.shape_cast %245 : vector<2x1xf32> to vector<2x1x1xf32>
    %247 = arith.mulf %237, %42 : vector<2x8x8xf32>
    %cst_106 = arith.constant 0.00247875229 : f32
    %248 = vector.broadcast %cst_106 : f32 to vector<2x8x8xf32>
    %249 = arith.mulf %247, %248 : vector<2x8x8xf32>
    %cst_107 = arith.constant dense<0.000000e+00> : vector<2x8xf32>
    %250 = vector.multi_reduction <add>, %249, %cst_107 [2] : vector<2x8x8xf32> to vector<2x8xf32>
    %251 = vector.shape_cast %250 : vector<2x8xf32> to vector<2x8x1xf32>
    %cst_108 = arith.constant 1.000000e-10 : f32
    %252 = vector.broadcast %cst_108 : f32 to vector<2x8x1xf32>
    %253 = arith.maximumf %251, %252 : vector<2x8x1xf32>
    %254 = math.log %253 : vector<2x8x1xf32>
    %cst_109 = arith.constant 0.00999999977 : f32
    %255 = vector.broadcast %cst_109 : f32 to vector<2x8x1xf32>
    %256 = arith.mulf %254, %255 : vector<2x8x1xf32>
    %cst_110 = arith.constant dense<0.000000e+00> : vector<2x1xf32>
    %257 = vector.multi_reduction <add>, %256, %cst_110 [1] : vector<2x8x1xf32> to vector<2x1xf32>
    %258 = vector.shape_cast %257 : vector<2x1xf32> to vector<2x1x1xf32>
    %259 = arith.mulf %249, %42 : vector<2x8x8xf32>
    %cst_111 = arith.constant 9.118820e-04 : f32
    %260 = vector.broadcast %cst_111 : f32 to vector<2x8x8xf32>
    %261 = arith.mulf %259, %260 : vector<2x8x8xf32>
    %cst_112 = arith.constant dense<0.000000e+00> : vector<2x8xf32>
    %262 = vector.multi_reduction <add>, %261, %cst_112 [2] : vector<2x8x8xf32> to vector<2x8xf32>
    %263 = vector.shape_cast %262 : vector<2x8xf32> to vector<2x8x1xf32>
    %cst_113 = arith.constant 1.000000e-10 : f32
    %264 = vector.broadcast %cst_113 : f32 to vector<2x8x1xf32>
    %265 = arith.maximumf %263, %264 : vector<2x8x1xf32>
    %266 = math.log %265 : vector<2x8x1xf32>
    %cst_114 = arith.constant 0.00999999977 : f32
    %267 = vector.broadcast %cst_114 : f32 to vector<2x8x1xf32>
    %268 = arith.mulf %266, %267 : vector<2x8x1xf32>
    %cst_115 = arith.constant dense<0.000000e+00> : vector<2x1xf32>
    %269 = vector.multi_reduction <add>, %268, %cst_115 [1] : vector<2x8x1xf32> to vector<2x1xf32>
    %270 = vector.shape_cast %269 : vector<2x1xf32> to vector<2x1x1xf32>
    %271 = arith.mulf %261, %42 : vector<2x8x8xf32>
    %cst_116 = arith.constant 3.35462624E-4 : f32
    %272 = vector.broadcast %cst_116 : f32 to vector<2x8x8xf32>
    %273 = arith.mulf %271, %272 : vector<2x8x8xf32>
    %cst_117 = arith.constant dense<0.000000e+00> : vector<2x8xf32>
    %274 = vector.multi_reduction <add>, %273, %cst_117 [2] : vector<2x8x8xf32> to vector<2x8xf32>
    %275 = vector.shape_cast %274 : vector<2x8xf32> to vector<2x8x1xf32>
    %cst_118 = arith.constant 1.000000e-10 : f32
    %276 = vector.broadcast %cst_118 : f32 to vector<2x8x1xf32>
    %277 = arith.maximumf %275, %276 : vector<2x8x1xf32>
    %278 = math.log %277 : vector<2x8x1xf32>
    %cst_119 = arith.constant 0.00999999977 : f32
    %279 = vector.broadcast %cst_119 : f32 to vector<2x8x1xf32>
    %280 = arith.mulf %278, %279 : vector<2x8x1xf32>
    %cst_120 = arith.constant dense<0.000000e+00> : vector<2x1xf32>
    %281 = vector.multi_reduction <add>, %280, %cst_120 [1] : vector<2x8x1xf32> to vector<2x1xf32>
    %282 = vector.shape_cast %281 : vector<2x1xf32> to vector<2x1x1xf32>
    %283 = arith.mulf %273, %42 : vector<2x8x8xf32>
    %cst_121 = arith.constant 1.23409802E-4 : f32
    %284 = vector.broadcast %cst_121 : f32 to vector<2x8x8xf32>
    %285 = arith.mulf %283, %284 : vector<2x8x8xf32>
    %cst_122 = arith.constant dense<0.000000e+00> : vector<2x8xf32>
    %286 = vector.multi_reduction <add>, %285, %cst_122 [2] : vector<2x8x8xf32> to vector<2x8xf32>
    %287 = vector.shape_cast %286 : vector<2x8xf32> to vector<2x8x1xf32>
    %cst_123 = arith.constant 1.000000e-10 : f32
    %288 = vector.broadcast %cst_123 : f32 to vector<2x8x1xf32>
    %289 = arith.maximumf %287, %288 : vector<2x8x1xf32>
    %290 = math.log %289 : vector<2x8x1xf32>
    %cst_124 = arith.constant 0.00999999977 : f32
    %291 = vector.broadcast %cst_124 : f32 to vector<2x8x1xf32>
    %292 = arith.mulf %290, %291 : vector<2x8x1xf32>
    %cst_125 = arith.constant dense<0.000000e+00> : vector<2x1xf32>
    %293 = vector.multi_reduction <add>, %292, %cst_125 [1] : vector<2x8x1xf32> to vector<2x1xf32>
    %294 = vector.shape_cast %293 : vector<2x1xf32> to vector<2x1x1xf32>
    %cst_126 = arith.constant 0.000000e+00 : f32
    %295 = vector.broadcast %cst_126 : f32 to vector<2x1x107xf32>
    %296 = tpu.concatenate %39, %57, %69, %81, %93, %105, %120, %132, %144, %156, %168, %183, %195, %207, %219, %231 in 2 : vector<2x1x1xf32>, vector<2x1x1xf32>, vector<2x1x1xf32>, vector<2x1x1xf32>, vector<2x1x1xf32>, vector<2x1x1xf32>, vector<2x1x1xf32>, vector<2x1x1xf32>, vector<2x1x1xf32>, vector<2x1x1xf32>, vector<2x1x1xf32>, vector<2x1x1xf32>, vector<2x1x1xf32>, vector<2x1x1xf32>, vector<2x1x1xf32>, vector<2x1x1xf32> -> vector<2x1x16xf32>
    %297 = tpu.concatenate %246, %258, %270, %282, %294, %295 in 2 : vector<2x1x1xf32>, vector<2x1x1xf32>, vector<2x1x1xf32>, vector<2x1x1xf32>, vector<2x1x1xf32>, vector<2x1x107xf32> -> vector<2x1x112xf32>
    %298 = tpu.concatenate %296, %297 in 2 : vector<2x1x16xf32>, vector<2x1x112xf32> -> vector<2x1x128xf32>
    %c0_127 = arith.constant 0 : index
    %c0_128 = arith.constant 0 : index
    %c0_129 = arith.constant 0 : index
    %299 = vector.load %arg5[%c0_127, %c0_128, %c0_129] : memref<2x1x128xf32, #tpu.memory_space<vmem>>, vector<2x1x128xf32>
    tpu.vector_store %arg5[%c0_127, %c0_128, %c0_129], %298 {strides = array<i32>} : memref<2x1x128xf32, #tpu.memory_space<vmem>>, vector<2x1x128xf32>,
    return
  }
  func.func @transform_0(%arg0: i32) -> (i32, i32, i32) {
    %c0_i32 = arith.constant 0 : i32
    %c0_i32_0 = arith.constant 0 : i32
    %c0_i32_1 = arith.constant 0 : i32
    return %arg0, %c0_i32, %c0_i32_0 : i32, i32, i32
  }
  func.func @transform_1(%arg0: i32) -> (i32, i32, i32) {
    %c0_i32 = arith.constant 0 : i32
    %c0_i32_0 = arith.constant 0 : i32
    %c0_i32_1 = arith.constant 0 : i32
    return %arg0, %c0_i32, %c0_i32_0 : i32, i32, i32
  }
  func.func @transform_2(%arg0: i32) -> (i32, i32, i32) {
    %c0_i32 = arith.constant 0 : i32
    %c0_i32_0 = arith.constant 0 : i32
    %c0_i32_1 = arith.constant 0 : i32
    return %arg0, %c0_i32, %c0_i32_0 : i32, i32, i32
  }
  func.func @transform_3(%arg0: i32) -> (i32, i32, i32) {
    %c0_i32 = arith.constant 0 : i32
    %c0_i32_0 = arith.constant 0 : i32
    %c0_i32_1 = arith.constant 0 : i32
    return %arg0, %c0_i32, %c0_i32_0 : i32, i32, i32
  }
  func.func @transform_4(%arg0: i32) -> (i32, i32, i32) {
    %c0_i32 = arith.constant 0 : i32
    %c0_i32_0 = arith.constant 0 : i32
    %c0_i32_1 = arith.constant 0 : i32
    return %arg0, %c0_i32, %c0_i32_0 : i32, i32, i32
  }
}

</mosaic_0001>

<llo_original>
// kernel: tpu_custom_call.1
$region0: #{tpu_custom_call.1}
  #allocation0 [shape = 'u32[]', space=smem, size = 0x4, offset = 0x4, fixed_abs, tag = 'smem constant byte address 0x4 - core index']
  #allocation1 [shape = 'u32[144,128]{1,0:T(1,128)}', space=vmem, size = 0x12000, scoped, tag = 'internal scratch']
  %s0 = inlined_call_operand.vmem [shape: f32[4,8,32], index: 0, kind: input, shape index: {}]
  %s1 = inlined_call_operand.vmem [shape: f32[4,8,1], index: 1, kind: input, shape index: {}]
  %s2 = inlined_call_operand.vmem [shape: f32[4,8,32], index: 2, kind: input, shape index: {}]
  %s3 = inlined_call_operand.vmem [shape: f32[4,8,1], index: 3, kind: input, shape index: {}]
  %s4 = inlined_call_operand.hbm [shape: f32[4,1,128], index: 4, kind: output, shape index: {}]
  %s5 = sld [smem:[#allocation0]]
  $region49: #{tpu_custom_call.1} parent=0
    _
  %s7 = ssub.s32 1, %s5
  %s8 = scalar_select 0, %s7, %s5
  $region1: #{tpu_custom_call.1} parent=0
    #allocation2 [shape = 'u8[2048]{0}', space=vmem, size = 0x800, scoped, tag = 'output window, operand 0']
    #allocation3 [shape = 's32[2]{0}', space=sflag, size = 0x8, scoped, tag = 'scoped memory for tpu_custom_call.1']
    %9 = vsyncpa [#allocation3], 0
    %s10 = scalar_lea.sflag [#allocation3], 1
    %11 = vsyncpa %s10, 0
    loop: start=0, step=1, limit=4
    $region2: #{tpu_custom_call.1} parent=1 // loop_pre_header
      _
    $region3: #{tpu_custom_call.1} parent=1 // loop_header
      %s13 = sphi 0, %s17
      %p14 = scmp.ge.s32.totalorder %s13, 4
      %s23 = sphi 0, %s25
      %s26 = sphi 0, %s23
      %s27 = sphi 0, %s26
      %s43 = sphi 0, %s27
      %s49 = sphi 0, %s51
      %s52 = sphi 0, %s49
      %s53 = sphi 0, %s52
      %s69 = sphi 0, %s53
      %s75 = sphi 0, %s77
      %s78 = sphi 0, %s75
      %s79 = sphi 0, %s78
      %s95 = sphi 0, %s79
      %s101 = sphi 0, %s103
      %s104 = sphi 0, %s101
      %s105 = sphi 0, %s104
      %s121 = sphi 0, %s105
      %s127 = sphi 0, %s129
      %s130 = sphi 0, %s127
      %s131 = sphi 0, %s130
      %s147 = sphi 0, %s131
    $region4: #{tpu_custom_call.1} parent=1 // loop_header_branch
      %16 = sbr.rel (%p14) target = $region8
    $region5: #{tpu_custom_call.1} parent=1 // loop_body
      %s18 = ssub.s32 %s13, 1
      %s19 = ssub.s32 %s13, 2
      %s20 = sadd.s32 %s13, 1
      %s21 = ssub.s32 %s13, %s20
      %p22 = scmp.eq.s32.totalorder %s21, 0
      %s24 = sadd.s32 %s23, 1
      %s25 = scalar_select %p22, %s23, %s24
      %p28 = pneg %p22
      %p29 = scmp.eq.s32.totalorder %s13, 1
      %p30 = por %p28, %p29
      %p31 = scmp.ne.s32.totalorder %s23, %s26
      %p32 = scmp.eq.s32.totalorder %s13, 0
      %p33 = por %p31, %p32
      %p34 = scmp.ne.s32.totalorder %s23, %s26
      %p35 = scmp.eq.s32.totalorder %s18, 1
      %p36 = por %p34, %p35
      %p37 = scmp.ne.s32.totalorder %s26, %s27
      %p38 = scmp.eq.s32.totalorder %s18, 0
      %p39 = por %p37, %p38
      %p40 = scmp.ne.s32.totalorder %s26, %s27
      %p41 = scmp.eq.s32.totalorder %s19, 1
      %p42 = por %p40, %p41
      %p44 = scmp.ne.s32.totalorder %s27, %s43
      %p45 = scmp.eq.s32.totalorder %s19, 0
      %p46 = por %p44, %p45
      %s47 = ssub.s32 %s13, %s20
      %p48 = scmp.eq.s32.totalorder %s47, 0
      %s50 = sadd.s32 %s49, 1
      %s51 = scalar_select %p48, %s49, %s50
      %p54 = pneg %p48
      %p55 = scmp.eq.s32.totalorder %s13, 1
      %p56 = por %p54, %p55
      %p57 = scmp.ne.s32.totalorder %s49, %s52
      %p58 = scmp.eq.s32.totalorder %s13, 0
      %p59 = por %p57, %p58
      %p60 = scmp.ne.s32.totalorder %s49, %s52
      %p61 = scmp.eq.s32.totalorder %s18, 1
      %p62 = por %p60, %p61
      %p63 = scmp.ne.s32.totalorder %s52, %s53
      %p64 = scmp.eq.s32.totalorder %s18, 0
      %p65 = por %p63, %p64
      %p66 = scmp.ne.s32.totalorder %s52, %s53
      %p67 = scmp.eq.s32.totalorder %s19, 1
      %p68 = por %p66, %p67
      %p70 = scmp.ne.s32.totalorder %s53, %s69
      %p71 = scmp.eq.s32.totalorder %s19, 0
      %p72 = por %p70, %p71
      %s73 = ssub.s32 %s13, %s20
      %p74 = scmp.eq.s32.totalorder %s73, 0
      %s76 = sadd.s32 %s75, 1
      %s77 = scalar_select %p74, %s75, %s76
      %p80 = pneg %p74
      %p81 = scmp.eq.s32.totalorder %s13, 1
      %p82 = por %p80, %p81
      %p83 = scmp.ne.s32.totalorder %s75, %s78
      %p84 = scmp.eq.s32.totalorder %s13, 0
      %p85 = por %p83, %p84
      %p86 = scmp.ne.s32.totalorder %s75, %s78
      %p87 = scmp.eq.s32.totalorder %s18, 1
      %p88 = por %p86, %p87
      %p89 = scmp.ne.s32.totalorder %s78, %s79
      %p90 = scmp.eq.s32.totalorder %s18, 0
      %p91 = por %p89, %p90
      %p92 = scmp.ne.s32.totalorder %s78, %s79
      %p93 = scmp.eq.s32.totalorder %s19, 1
      %p94 = por %p92, %p93
      %p96 = scmp.ne.s32.totalorder %s79, %s95
      %p97 = scmp.eq.s32.totalorder %s19, 0
      %p98 = por %p96, %p97
      %s99 = ssub.s32 %s13, %s20
      %p100 = scmp.eq.s32.totalorder %s99, 0
      %s102 = sadd.s32 %s101, 1
      %s103 = scalar_select %p100, %s101, %s102
      %p106 = pneg %p100
      %p107 = scmp.eq.s32.totalorder %s13, 1
      %p108 = por %p106, %p107
      %p109 = scmp.ne.s32.totalorder %s101, %s104
      %p110 = scmp.eq.s32.totalorder %s13, 0
      %p111 = por %p109, %p110
      %p112 = scmp.ne.s32.totalorder %s101, %s104
      %p113 = scmp.eq.s32.totalorder %s18, 1
      %p114 = por %p112, %p113
      %p115 = scmp.ne.s32.totalorder %s104, %s105
      %p116 = scmp.eq.s32.totalorder %s18, 0
      %p117 = por %p115, %p116
      %p118 = scmp.ne.s32.totalorder %s104, %s105
      %p119 = scmp.eq.s32.totalorder %s19, 1
      %p120 = por %p118, %p119
      %p122 = scmp.ne.s32.totalorder %s105, %s121
      %p123 = scmp.eq.s32.totalorder %s19, 0
      %p124 = por %p122, %p123
      %s125 = ssub.s32 %s13, %s20
      %p126 = scmp.eq.s32.totalorder %s125, 0
      %s128 = sadd.s32 %s127, 1
      %s129 = scalar_select %p126, %s127, %s128
      %p132 = pneg %p126
      %p133 = scmp.eq.s32.totalorder %s13, 1
      %p134 = por %p132, %p133
      %p135 = scmp.ne.s32.totalorder %s127, %s130
      %p136 = scmp.eq.s32.totalorder %s13, 0
      %p137 = por %p135, %p136
      %p138 = scmp.ne.s32.totalorder %s127, %s130
      %p139 = scmp.eq.s32.totalorder %s18, 1
      %p140 = por %p138, %p139
      %p141 = scmp.ne.s32.totalorder %s130, %s131
      %p142 = scmp.eq.s32.totalorder %s18, 0
      %p143 = por %p141, %p142
      %p144 = scmp.ne.s32.totalorder %s130, %s131
      %p145 = scmp.eq.s32.totalorder %s19, 1
      %p146 = por %p144, %p145
      %p148 = scmp.ne.s32.totalorder %s131, %s147
      %p149 = scmp.eq.s32.totalorder %s19, 0
      %p150 = por %p148, %p149
      %p151 = scmp.le.s32.totalorder 1, %s13
      %p152 = scmp.lt.s32.totalorder %s13, 3
      %p153 = pnand %p151, %p152
      %p154 = pneg %p153
      // Predicated region
      $region9: #{tpu_custom_call.1} parent=5 // pred_check
        _
      $region10: #{tpu_custom_call.1} parent=5 // pred_check_branch
        %156 = sbr.rel (%p153) target = $region12
      $region11: #{tpu_custom_call.1} parent=5 // pred_region
        %s157 = ssub.s32 %s13, 1
      $region12: #{tpu_custom_call.1} parent=5 // pred_fallthru
        _
      %p158 = scmp.lt.s32.totalorder %s13, 2
      // Predicated region
      $region13: #{tpu_custom_call.1} parent=5 // pred_check
        %p159 = pneg %p158
      $region14: #{tpu_custom_call.1} parent=5 // pred_check_branch
        %161 = sbr.rel (%p159) target = $region16
      $region15: #{tpu_custom_call.1} parent=5 // pred_region
        // Predicated region
        $region17: #{tpu_custom_call.1} parent=15 // pred_check
          %p162 = pneg %p33
        $region18: #{tpu_custom_call.1} parent=15 // pred_check_branch
          %164 = sbr.rel (%p162) target = $region20
        $region19: #{tpu_custom_call.1} parent=15 // pred_region
          %s165 = smul.u32 2, %s13
          %p166 = scmp.lt.s32.totalorder %s165, 3
          %s167 = scalar_select %p166, %s165, 3
          %s168 = smul.addr %s167, 8
          %s169 = scalar_lea.vmem %s0, %s168
          %s170 = smul.u32 2, %s13
        $region20: #{tpu_custom_call.1} parent=15 // pred_fallthru
          _
        // Predicated region
        $region21: #{tpu_custom_call.1} parent=15 // pred_check
          %p171 = pneg %p59
        $region22: #{tpu_custom_call.1} parent=15 // pred_check_branch
          %173 = sbr.rel (%p171) target = $region24
        $region23: #{tpu_custom_call.1} parent=15 // pred_region
          %s174 = smul.u32 2, %s13
          %p175 = scmp.lt.s32.totalorder %s174, 3
          %s176 = scalar_select %p175, %s174, 3
          %s177 = smul.addr %s176, 8
          %s178 = scalar_lea.vmem %s1, %s177
          %s179 = smul.u32 2, %s13
        $region24: #{tpu_custom_call.1} parent=15 // pred_fallthru
          _
        // Predicated region
        $region25: #{tpu_custom_call.1} parent=15 // pred_check
          %p180 = pneg %p85
        $region26: #{tpu_custom_call.1} parent=15 // pred_check_branch
          %182 = sbr.rel (%p180) target = $region28
        $region27: #{tpu_custom_call.1} parent=15 // pred_region
          %s183 = smul.u32 2, %s13
          %p184 = scmp.lt.s32.totalorder %s183, 3
          %s185 = scalar_select %p184, %s183, 3
          %s186 = smul.addr %s185, 8
          %s187 = scalar_lea.vmem %s2, %s186
          %s188 = smul.u32 2, %s13
        $region28: #{tpu_custom_call.1} parent=15 // pred_fallthru
          _
        // Predicated region
        $region29: #{tpu_custom_call.1} parent=15 // pred_check
          %p189 = pneg %p111
        $region30: #{tpu_custom_call.1} parent=15 // pred_check_branch
          %191 = sbr.rel (%p189) target = $region32
        $region31: #{tpu_custom_call.1} parent=15 // pred_region
          %s192 = smul.u32 2, %s13
          %p193 = scmp.lt.s32.totalorder %s192, 3
          %s194 = scalar_select %p193, %s192, 3
          %s195 = smul.addr %s194, 8
          %s196 = scalar_lea.vmem %s3, %s195
          %s197 = smul.u32 2, %s13
        $region32: #{tpu_custom_call.1} parent=15 // pred_fallthru
          _
      $region16: #{tpu_custom_call.1} parent=5 // pred_fallthru
        _
      %p198 = scmp.le.s32.totalorder 1, %s13
      %p199 = scmp.lt.s32.totalorder %s13, 3
      %p200 = pnand %p198, %p199
      %p201 = pneg %p200
      // Predicated region
      $region33: #{tpu_custom_call.1} parent=5 // pred_check
        _
      $region34: #{tpu_custom_call.1} parent=5 // pred_check_branch
        %203 = sbr.rel (%p200) target = $region36
      $region35: #{tpu_custom_call.1} parent=5 // pred_region
        %s204 = ssub.s32 %s13, 1
        %s205 = smul.u32 2, %s18
        %p206 = scmp.lt.s32.totalorder %s205, 3
        %s207 = scalar_select %p206, %s205, 3
        %s208 = smul.addr %s207, 8
        %s209 = scalar_lea.vmem %s0, %s208
        %p210 = pneg %p39
        %p211 = pneg %p36
        %s212 = smul.u32 2, %s18
        %p213 = scmp.lt.s32.totalorder %s212, 3
        %s214 = scalar_select %p213, %s212, 3
        %s215 = smul.addr %s214, 8
        %s216 = scalar_lea.vmem %s1, %s215
        %p217 = pneg %p65
        %p218 = pneg %p62
        %s219 = smul.u32 2, %s18
        %p220 = scmp.lt.s32.totalorder %s219, 3
        %s221 = scalar_select %p220, %s219, 3
        %s222 = smul.addr %s221, 8
        %s223 = scalar_lea.vmem %s2, %s222
        %p224 = pneg %p91
        %p225 = pneg %p88
        %s226 = smul.u32 2, %s18
        %p227 = scmp.lt.s32.totalorder %s226, 3
        %s228 = scalar_select %p227, %s226, 3
        %s229 = smul.addr %s228, 8
        %s230 = scalar_lea.vmem %s3, %s229
        %p231 = pneg %p117
        %p232 = pneg %p114
        %p233 = pneg %p143
        %p234 = pneg %p140
        %s235 = sand.u32 %s130, 1
        %s236 = scalar_lea.sflag [#allocation3], %s235
        %s237 = sand.u32 %s130, 1
        %s238 = smul.addr %s237, 2
        %s239 = scalar_lea.vmem [#allocation2], %s238
        %s240 = smul.u32 2, %s18
        %p241 = scmp.lt.s32.totalorder %s240, 3
        %s242 = scalar_select %p241, %s240, 3
        %s243 = smul.addr %s242, 8
        %s244 = scalar_lea.vmem %s0, %s243
        %s245 = smul.u32 2, %s18
        %s246 = smul.u32 2, %s18
        %p247 = scmp.lt.s32.totalorder %s246, 3
        %s248 = scalar_select %p247, %s246, 3
        %s249 = smul.addr %s248, 8
        %s250 = scalar_lea.vmem %s1, %s249
        %s251 = smul.u32 2, %s18
        %s252 = smul.u32 2, %s18
        %p253 = scmp.lt.s32.totalorder %s252, 3
        %s254 = scalar_select %p253, %s252, 3
        %s255 = smul.addr %s254, 8
        %s256 = scalar_lea.vmem %s2, %s255
        %s257 = smul.u32 2, %s18
        %s258 = smul.u32 2, %s18
        %p259 = scmp.lt.s32.totalorder %s258, 3
        %s260 = scalar_select %p259, %s258, 3
        %s261 = smul.addr %s260, 8
        %s262 = scalar_lea.vmem %s3, %s261
        %s263 = smul.u32 2, %s18
        %s264 = smul.u32 2, %s18
        %v265 = vld [vmem:[%s250] sm:$0xff]
        %v266 = vld [vmem:[%s250 + $0x8] sm:$0xff]
        %v267 = vld [vmem:[%s262] sm:$0xff]
        %v268 = vld [vmem:[%s262 + $0x8] sm:$0xff]
        %v269 = vld [vmem:[%s244] sm:$0xff]
        %v270 = vld [vmem:[%s244 + $0x8] sm:$0xff]
        %272 = vset.pattern.permute.xlu0 0
        %273 = vperm.xlu0 %272, %v265
        %v274 = vpop.permute.xlu0 %273
        %277 = vset.pattern.permute.xlu0 0
        %278 = vperm.xlu0 %277, %v266
        %v279 = vpop.permute.xlu0 %278
        %v281 = vmul.f32 %v269, %v274
        %v282 = vmul.f32 %v270, %v279
        %v283 = vld [vmem:[%s256] sm:$0xff]
        %v284 = vld [vmem:[%s256 + $0x8] sm:$0xff]
        %286 = vset.pattern.permute.xlu0 0
        %287 = vperm.xlu0 %286, %v267
        %v288 = vpop.permute.xlu0 %287
        %291 = vset.pattern.permute.xlu0 0
        %292 = vperm.xlu0 %291, %v268
        %v293 = vpop.permute.xlu0 %292
        %v295 = vmul.f32 %v283, %v288
        %v296 = vmul.f32 %v284, %v293
        %v297 = vmul.f32 %v281, %v281
        %v298 = vmul.f32 %v282, %v282
        %vm299 = vcmask 261120
        %v300 = vsel %vm299, %v297, 0.0
        %301 = vadd.xlane.f32.xlu0 %v300
        %v302 = vpop.xlane.xlu0 %301
        %v303 = vsel %vm299, %v298, 0.0
        %304 = vadd.xlane.f32.xlu0 %v303
        %v305 = vpop.xlane.xlu0 %304
        %v306 = vmax.f32 %v302, 1e-20
        %v307 = vmax.f32 %v305, 1e-20
        %v308 = vrsqrt.pop %v306
        %v309 = vrsqrt.pop %v307
        %v310 = vmul.f32 %v295, %v295
        %v311 = vmul.f32 %v296, %v296
        %v312 = vsel %vm299, %v310, 0.0
        %313 = vadd.xlane.f32.xlu0 %v312
        %v314 = vpop.xlane.xlu0 %313
        %v315 = vsel %vm299, %v311, 0.0
        %316 = vadd.xlane.f32.xlu0 %v315
        %v317 = vpop.xlane.xlu0 %316
        %v318 = vmax.f32 %v314, 1e-20
        %v319 = vmax.f32 %v317, 1e-20
        %v320 = vrsqrt.pop %v318
        %v321 = vrsqrt.pop %v319
        %v322 = vmul.f32 %v281, %v308
        %v323 = vmul.f32 %v282, %v309
        %v324 = vmul.f32 %v295, %v320
        %v325 = vmul.f32 %v296, %v321
        %v327 = vsel %vm299, %v322, 0
        %v330 = vsel %vm299, %v324, 0
        %332 = vmatprep.subr.mxu0 0.0
        %333 = vmatpush1.xpose.msra.mxu0 0.0
        %334 = vmatprep.subr.mxu0 0.0
        %335 = vmatpush1.xpose.msra.mxu0 0.0
        %336 = vmatprep.subr.mxu0 0.0
        %337 = vmatpush1.xpose.msra.mxu0 0.0
        %338 = vmatprep.subr.mxu0 0.0
        %339 = vmatpush1.xpose.msra.mxu0 0.0
        %340 = vmatprep.subr.mxu0 0.0
        %341 = vmatpush1.xpose.msra.mxu0 0.0
        %342 = vmatprep.subr.mxu0 0.0
        %343 = vmatpush1.xpose.msra.mxu0 0.0
        %344 = vmatprep.subr.mxu0 0.0
        %345 = vmatpush1.xpose.msra.mxu0 0.0
        %346 = vmatprep.subr.mxu0 0.0
        %347 = vmatpush1.xpose.msra.mxu0 0.0
        %348 = vmatprep.subr.mxu0 0.0
        %349 = vmatpush1.xpose.msra.mxu0 0.0
        %350 = vmatprep.subr.mxu0 0.0
        %351 = vmatpush1.xpose.msra.mxu0 0.0
        %352 = vmatprep.subr.mxu0 0.0
        %353 = vmatpush1.xpose.msra.mxu0 0.0
        %354 = vmatprep.subr.mxu0 0.0
        %355 = vmatpush1.xpose.msra.mxu0 0.0
        %356 = vmatprep.subr.mxu0 0.0
        %357 = vmatpush1.xpose.msra.mxu0 0.0
        %358 = vmatprep.subr.mxu0 0.0
        %359 = vmatpush1.xpose.msra.mxu0 0.0
        %360 = vmatprep.subr.mxu0 0.0
        %361 = vmatpush1.xpose.msra.mxu0 0.0
        %362 = vmatprep.subr.mxu0 0.0
        %v363 = vand.u32 %v330, 4294901760
        %364 = vmatpush1.xpose.msra.mxu0 %v363
        %365 = vmatprep.subr.mxu0 0.0
        %366 = vmatpush2.xpose.msra.mxu0 0.0
        %367 = vmatprep.subr.mxu0 0.0
        %368 = vmatpush2.xpose.msra.mxu0 0.0
        %369 = vmatprep.subr.mxu0 0.0
        %370 = vmatpush2.xpose.msra.mxu0 0.0
        %371 = vmatprep.subr.mxu0 0.0
        %372 = vmatpush2.xpose.msra.mxu0 0.0
        %373 = vmatprep.subr.mxu0 0.0
        %374 = vmatpush2.xpose.msra.mxu0 0.0
        %375 = vmatprep.subr.mxu0 0.0
        %376 = vmatpush2.xpose.msra.mxu0 0.0
        %377 = vmatprep.subr.mxu0 0.0
        %378 = vmatpush2.xpose.msra.mxu0 0.0
        %379 = vmatprep.subr.mxu0 0.0
        %380 = vmatpush2.xpose.msra.mxu0 0.0
        %381 = vmatprep.subr.mxu0 0.0
        %382 = vmatpush2.xpose.msra.mxu0 0.0
        %383 = vmatprep.subr.mxu0 0.0
        %384 = vmatpush2.xpose.msra.mxu0 0.0
        %385 = vmatprep.subr.mxu0 0.0
        %386 = vmatpush2.xpose.msra.mxu0 0.0
        %387 = vmatprep.subr.mxu0 0.0
        %388 = vmatpush2.xpose.msra.mxu0 0.0
        %389 = vmatprep.subr.mxu0 0.0
        %390 = vmatpush2.xpose.msra.mxu0 0.0
        %391 = vmatprep.subr.mxu0 0.0
        %392 = vmatpush2.xpose.msra.mxu0 0.0
        %393 = vmatprep.subr.mxu0 0.0
        %394 = vmatpush2.xpose.msra.mxu0 0.0
        %395 = vmatprep.subr.mxu0 0.0
        %396 = vmatpush2.xpose.msra.mxu0 0.0
        %397 = vmatprep.mubr.f32.mxu0 0.0
        %v398 = vand.u32 %v327, 4294901760
        %v399 = vsub.f32 %v327, %v398
        %v400 = vand.u32 %v399, 4294901760
        %v401 = vsub.f32 %v399, %v400
        %v402 = vand.u32 %v401, 4294901760
        %403 = vmatmul.mubr.f32.gmra.mxu0 %v402
        %v404 = vpop.f32.mrf.mxu0
        %v405 = vadd.f32 0.0, %v404
        %v406 = vpop.f32.mrf.mxu0
        %407 = vdwg.mxu0
        %408 = vmatprep.subr.mxu0 0.0
        %409 = vmatpush1.xpose.msra.mxu0 0.0
        %410 = vmatprep.subr.mxu0 0.0
        %411 = vmatpush1.xpose.msra.mxu0 0.0
        %412 = vmatprep.subr.mxu0 0.0
        %413 = vmatpush1.xpose.msra.mxu0 0.0
        %414 = vmatprep.subr.mxu0 0.0
        %415 = vmatpush1.xpose.msra.mxu0 0.0
        %416 = vmatprep.subr.mxu0 0.0
        %417 = vmatpush1.xpose.msra.mxu0 0.0
        %418 = vmatprep.subr.mxu0 0.0
        %419 = vmatpush1.xpose.msra.mxu0 0.0
        %420 = vmatprep.subr.mxu0 0.0
        %421 = vmatpush1.xpose.msra.mxu0 0.0
        %422 = vmatprep.subr.mxu0 0.0
        %423 = vmatpush1.xpose.msra.mxu0 0.0
        %424 = vmatprep.subr.mxu0 0.0
        %425 = vmatpush1.xpose.msra.mxu0 0.0
        %426 = vmatprep.subr.mxu0 0.0
        %427 = vmatpush1.xpose.msra.mxu0 0.0
        %428 = vmatprep.subr.mxu0 0.0
        %429 = vmatpush1.xpose.msra.mxu0 0.0
        %430 = vmatprep.subr.mxu0 0.0
        %431 = vmatpush1.xpose.msra.mxu0 0.0
        %432 = vmatprep.subr.mxu0 0.0
        %433 = vmatpush1.xpose.msra.mxu0 0.0
        %434 = vmatprep.subr.mxu0 0.0
        %435 = vmatpush1.xpose.msra.mxu0 0.0
        %436 = vmatprep.subr.mxu0 0.0
        %437 = vmatpush1.xpose.msra.mxu0 0.0
        %438 = vmatprep.subr.mxu0 0.0
        %v439 = vand.u32 %v330, 4294901760
        %v440 = vsub.f32 %v330, %v439
        %v441 = vand.u32 %v440, 4294901760
        %v442 = vsub.f32 %v440, %v441
        %v443 = vand.u32 %v442, 4294901760
        %444 = vmatpush1.xpose.msra.mxu0 %v443
        %445 = vmatprep.subr.mxu0 0.0
        %446 = vmatpush2.xpose.msra.mxu0 0.0
        %447 = vmatprep.subr.mxu0 0.0
        %448 = vmatpush2.xpose.msra.mxu0 0.0
        %449 = vmatprep.subr.mxu0 0.0
        %450 = vmatpush2.xpose.msra.mxu0 0.0
        %451 = vmatprep.subr.mxu0 0.0
        %452 = vmatpush2.xpose.msra.mxu0 0.0
        %453 = vmatprep.subr.mxu0 0.0
        %454 = vmatpush2.xpose.msra.mxu0 0.0
        %455 = vmatprep.subr.mxu0 0.0
        %456 = vmatpush2.xpose.msra.mxu0 0.0
        %457 = vmatprep.subr.mxu0 0.0
        %458 = vmatpush2.xpose.msra.mxu0 0.0
        %459 = vmatprep.subr.mxu0 0.0
        %460 = vmatpush2.xpose.msra.mxu0 0.0
        %461 = vmatprep.subr.mxu0 0.0
        %462 = vmatpush2.xpose.msra.mxu0 0.0
        %463 = vmatprep.subr.mxu0 0.0
        %464 = vmatpush2.xpose.msra.mxu0 0.0
        %465 = vmatprep.subr.mxu0 0.0
        %466 = vmatpush2.xpose.msra.mxu0 0.0
        %467 = vmatprep.subr.mxu0 0.0
        %468 = vmatpush2.xpose.msra.mxu0 0.0
        %469 = vmatprep.subr.mxu0 0.0
        %470 = vmatpush2.xpose.msra.mxu0 0.0
        %471 = vmatprep.subr.mxu0 0.0
        %472 = vmatpush2.xpose.msra.mxu0 0.0
        %473 = vmatprep.subr.mxu0 0.0
        %474 = vmatpush2.xpose.msra.mxu0 0.0
        %475 = vmatprep.subr.mxu0 0.0
        %476 = vmatpush2.xpose.msra.mxu0 0.0
        %477 = vmatprep.mubr.f32.mxu0 0.0
        %v478 = vand.u32 %v327, 4294901760
        %479 = vmatmul.mubr.f32.gmra.mxu0 %v478
        %v480 = vpop.f32.mrf.mxu0
        %v481 = vadd.f32 %v405, %v480
        %v482 = vpop.f32.mrf.mxu0
        %483 = vdwg.mxu0
        %484 = vmatprep.subr.mxu0 0.0
        %485 = vmatpush1.xpose.msra.mxu0 0.0
        %486 = vmatprep.subr.mxu0 0.0
        %487 = vmatpush1.xpose.msra.mxu0 0.0
        %488 = vmatprep.subr.mxu0 0.0
        %489 = vmatpush1.xpose.msra.mxu0 0.0
        %490 = vmatprep.subr.mxu0 0.0
        %491 = vmatpush1.xpose.msra.mxu0 0.0
        %492 = vmatprep.subr.mxu0 0.0
        %493 = vmatpush1.xpose.msra.mxu0 0.0
        %494 = vmatprep.subr.mxu0 0.0
        %495 = vmatpush1.xpose.msra.mxu0 0.0
        %496 = vmatprep.subr.mxu0 0.0
        %497 = vmatpush1.xpose.msra.mxu0 0.0
        %498 = vmatprep.subr.mxu0 0.0
        %499 = vmatpush1.xpose.msra.mxu0 0.0
        %500 = vmatprep.subr.mxu0 0.0
        %501 = vmatpush1.xpose.msra.mxu0 0.0
        %502 = vmatprep.subr.mxu0 0.0
        %503 = vmatpush1.xpose.msra.mxu0 0.0
        %504 = vmatprep.subr.mxu0 0.0
        %505 = vmatpush1.xpose.msra.mxu0 0.0
        %506 = vmatprep.subr.mxu0 0.0
        %507 = vmatpush1.xpose.msra.mxu0 0.0
        %508 = vmatprep.subr.mxu0 0.0
        %509 = vmatpush1.xpose.msra.mxu0 0.0
        %510 = vmatprep.subr.mxu0 0.0
        %511 = vmatpush1.xpose.msra.mxu0 0.0
        %512 = vmatprep.subr.mxu0 0.0
        %513 = vmatpush1.xpose.msra.mxu0 0.0
        %514 = vmatprep.subr.mxu0 0.0
        %v515 = vand.u32 %v330, 4294901760
        %v516 = vsub.f32 %v330, %v515
        %517 = vmatpush1.xpose.msra.mxu0 %v516
        %518 = vmatprep.subr.mxu0 0.0
        %519 = vmatpush2.xpose.msra.mxu0 0.0
        %520 = vmatprep.subr.mxu0 0.0
        %521 = vmatpush2.xpose.msra.mxu0 0.0
        %522 = vmatprep.subr.mxu0 0.0
        %523 = vmatpush2.xpose.msra.mxu0 0.0
        %524 = vmatprep.subr.mxu0 0.0
        %525 = vmatpush2.xpose.msra.mxu0 0.0
        %526 = vmatprep.subr.mxu0 0.0
        %527 = vmatpush2.xpose.msra.mxu0 0.0
        %528 = vmatprep.subr.mxu0 0.0
        %529 = vmatpush2.xpose.msra.mxu0 0.0
        %530 = vmatprep.subr.mxu0 0.0
        %531 = vmatpush2.xpose.msra.mxu0 0.0
        %532 = vmatprep.subr.mxu0 0.0
        %533 = vmatpush2.xpose.msra.mxu0 0.0
        %534 = vmatprep.subr.mxu0 0.0
        %535 = vmatpush2.xpose.msra.mxu0 0.0
        %536 = vmatprep.subr.mxu0 0.0
        %537 = vmatpush2.xpose.msra.mxu0 0.0
        %538 = vmatprep.subr.mxu0 0.0
        %539 = vmatpush2.xpose.msra.mxu0 0.0
        %540 = vmatprep.subr.mxu0 0.0
        %541 = vmatpush2.xpose.msra.mxu0 0.0
        %542 = vmatprep.subr.mxu0 0.0
        %543 = vmatpush2.xpose.msra.mxu0 0.0
        %544 = vmatprep.subr.mxu0 0.0
        %545 = vmatpush2.xpose.msra.mxu0 0.0
        %546 = vmatprep.subr.mxu0 0.0
        %547 = vmatpush2.xpose.msra.mxu0 0.0
        %548 = vmatprep.subr.mxu0 0.0
        %549 = vmatpush2.xpose.msra.mxu0 0.0
        %550 = vmatprep.mubr.f32.mxu0 0.0
        %v551 = vand.u32 %v327, 4294901760
        %v552 = vsub.f32 %v327, %v551
        %553 = vmatmul.mubr.f32.gmra.mxu0 %v552
        %v554 = vpop.f32.mrf.mxu0
        %v555 = vadd.f32 %v481, %v554
        %v556 = vpop.f32.mrf.mxu0
        %557 = vdwg.mxu0
        %558 = vmatprep.subr.mxu0 0.0
        %559 = vmatpush1.xpose.msra.mxu0 0.0
        %560 = vmatprep.subr.mxu0 0.0
        %561 = vmatpush1.xpose.msra.mxu0 0.0
        %562 = vmatprep.subr.mxu0 0.0
        %563 = vmatpush1.xpose.msra.mxu0 0.0
        %564 = vmatprep.subr.mxu0 0.0
        %565 = vmatpush1.xpose.msra.mxu0 0.0
        %566 = vmatprep.subr.mxu0 0.0
        %567 = vmatpush1.xpose.msra.mxu0 0.0
        %568 = vmatprep.subr.mxu0 0.0
        %569 = vmatpush1.xpose.msra.mxu0 0.0
        %570 = vmatprep.subr.mxu0 0.0
        %571 = vmatpush1.xpose.msra.mxu0 0.0
        %572 = vmatprep.subr.mxu0 0.0
        %573 = vmatpush1.xpose.msra.mxu0 0.0
        %574 = vmatprep.subr.mxu0 0.0
        %575 = vmatpush1.xpose.msra.mxu0 0.0
        %576 = vmatprep.subr.mxu0 0.0
        %577 = vmatpush1.xpose.msra.mxu0 0.0
        %578 = vmatprep.subr.mxu0 0.0
        %579 = vmatpush1.xpose.msra.mxu0 0.0
        %580 = vmatprep.subr.mxu0 0.0
        %581 = vmatpush1.xpose.msra.mxu0 0.0
        %582 = vmatprep.subr.mxu0 0.0
        %583 = vmatpush1.xpose.msra.mxu0 0.0
        %584 = vmatprep.subr.mxu0 0.0
        %585 = vmatpush1.xpose.msra.mxu0 0.0
        %586 = vmatprep.subr.mxu0 0.0
        %587 = vmatpush1.xpose.msra.mxu0 0.0
        %588 = vmatprep.subr.mxu0 0.0
        %v589 = vand.u32 %v330, 4294901760
        %590 = vmatpush1.xpose.msra.mxu0 %v589
        %591 = vmatprep.subr.mxu0 0.0
        %592 = vmatpush2.xpose.msra.mxu0 0.0
        %593 = vmatprep.subr.mxu0 0.0
        %594 = vmatpush2.xpose.msra.mxu0 0.0
        %595 = vmatprep.subr.mxu0 0.0
        %596 = vmatpush2.xpose.msra.mxu0 0.0
        %597 = vmatprep.subr.mxu0 0.0
        %598 = vmatpush2.xpose.msra.mxu0 0.0
        %599 = vmatprep.subr.mxu0 0.0
        %600 = vmatpush2.xpose.msra.mxu0 0.0
        %601 = vmatprep.subr.mxu0 0.0
        %602 = vmatpush2.xpose.msra.mxu0 0.0
        %603 = vmatprep.subr.mxu0 0.0
        %604 = vmatpush2.xpose.msra.mxu0 0.0
        %605 = vmatprep.subr.mxu0 0.0
        %606 = vmatpush2.xpose.msra.mxu0 0.0
        %607 = vmatprep.subr.mxu0 0.0
        %608 = vmatpush2.xpose.msra.mxu0 0.0
        %609 = vmatprep.subr.mxu0 0.0
        %610 = vmatpush2.xpose.msra.mxu0 0.0
        %611 = vmatprep.subr.mxu0 0.0
        %612 = vmatpush2.xpose.msra.mxu0 0.0
        %613 = vmatprep.subr.mxu0 0.0
        %614 = vmatpush2.xpose.msra.mxu0 0.0
        %615 = vmatprep.subr.mxu0 0.0
        %616 = vmatpush2.xpose.msra.mxu0 0.0
        %617 = vmatprep.subr.mxu0 0.0
        %618 = vmatpush2.xpose.msra.mxu0 0.0
        %619 = vmatprep.subr.mxu0 0.0
        %620 = vmatpush2.xpose.msra.mxu0 0.0
        %621 = vmatprep.subr.mxu0 0.0
        %622 = vmatpush2.xpose.msra.mxu0 0.0
        %623 = vmatprep.mubr.f32.mxu0 0.0
        %v624 = vand.u32 %v327, 4294901760
        %v625 = vsub.f32 %v327, %v624
        %v626 = vand.u32 %v625, 4294901760
        %627 = vmatmul.mubr.f32.gmra.mxu0 %v626
        %v628 = vpop.f32.mrf.mxu0
        %v629 = vadd.f32 %v555, %v628
        %v630 = vpop.f32.mrf.mxu0
        %631 = vdwg.mxu0
        %632 = vmatprep.subr.mxu0 0.0
        %633 = vmatpush1.xpose.msra.mxu0 0.0
        %634 = vmatprep.subr.mxu0 0.0
        %635 = vmatpush1.xpose.msra.mxu0 0.0
        %636 = vmatprep.subr.mxu0 0.0
        %637 = vmatpush1.xpose.msra.mxu0 0.0
        %638 = vmatprep.subr.mxu0 0.0
        %639 = vmatpush1.xpose.msra.mxu0 0.0
        %640 = vmatprep.subr.mxu0 0.0
        %641 = vmatpush1.xpose.msra.mxu0 0.0
        %642 = vmatprep.subr.mxu0 0.0
        %643 = vmatpush1.xpose.msra.mxu0 0.0
        %644 = vmatprep.subr.mxu0 0.0
        %645 = vmatpush1.xpose.msra.mxu0 0.0
        %646 = vmatprep.subr.mxu0 0.0
        %647 = vmatpush1.xpose.msra.mxu0 0.0
        %648 = vmatprep.subr.mxu0 0.0
        %649 = vmatpush1.xpose.msra.mxu0 0.0
        %650 = vmatprep.subr.mxu0 0.0
        %651 = vmatpush1.xpose.msra.mxu0 0.0
        %652 = vmatprep.subr.mxu0 0.0
        %653 = vmatpush1.xpose.msra.mxu0 0.0
        %654 = vmatprep.subr.mxu0 0.0
        %655 = vmatpush1.xpose.msra.mxu0 0.0
        %656 = vmatprep.subr.mxu0 0.0
        %657 = vmatpush1.xpose.msra.mxu0 0.0
        %658 = vmatprep.subr.mxu0 0.0
        %659 = vmatpush1.xpose.msra.mxu0 0.0
        %660 = vmatprep.subr.mxu0 0.0
        %661 = vmatpush1.xpose.msra.mxu0 0.0
        %662 = vmatprep.subr.mxu0 0.0
        %v663 = vand.u32 %v330, 4294901760
        %v664 = vsub.f32 %v330, %v663
        %v665 = vand.u32 %v664, 4294901760
        %666 = vmatpush1.xpose.msra.mxu0 %v665
        %667 = vmatprep.subr.mxu0 0.0
        %668 = vmatpush2.xpose.msra.mxu0 0.0
        %669 = vmatprep.subr.mxu0 0.0
        %670 = vmatpush2.xpose.msra.mxu0 0.0
        %671 = vmatprep.subr.mxu0 0.0
        %672 = vmatpush2.xpose.msra.mxu0 0.0
        %673 = vmatprep.subr.mxu0 0.0
        %674 = vmatpush2.xpose.msra.mxu0 0.0
        %675 = vmatprep.subr.mxu0 0.0
        %676 = vmatpush2.xpose.msra.mxu0 0.0
        %677 = vmatprep.subr.mxu0 0.0
        %678 = vmatpush2.xpose.msra.mxu0 0.0
        %679 = vmatprep.subr.mxu0 0.0
        %680 = vmatpush2.xpose.msra.mxu0 0.0
        %681 = vmatprep.subr.mxu0 0.0
        %682 = vmatpush2.xpose.msra.mxu0 0.0
        %683 = vmatprep.subr.mxu0 0.0
        %684 = vmatpush2.xpose.msra.mxu0 0.0
        %685 = vmatprep.subr.mxu0 0.0
        %686 = vmatpush2.xpose.msra.mxu0 0.0
        %687 = vmatprep.subr.mxu0 0.0
        %688 = vmatpush2.xpose.msra.mxu0 0.0
        %689 = vmatprep.subr.mxu0 0.0
        %690 = vmatpush2.xpose.msra.mxu0 0.0
        %691 = vmatprep.subr.mxu0 0.0
        %692 = vmatpush2.xpose.msra.mxu0 0.0
        %693 = vmatprep.subr.mxu0 0.0
        %694 = vmatpush2.xpose.msra.mxu0 0.0
        %695 = vmatprep.subr.mxu0 0.0
        %696 = vmatpush2.xpose.msra.mxu0 0.0
        %697 = vmatprep.subr.mxu0 0.0
        %698 = vmatpush2.xpose.msra.mxu0 0.0
        %699 = vmatprep.mubr.f32.mxu0 0.0
        %v700 = vand.u32 %v327, 4294901760
        %701 = vmatmul.mubr.f32.gmra.mxu0 %v700
        %v702 = vpop.f32.mrf.mxu0
        %v703 = vadd.f32 %v629, %v702
        %v704 = vpop.f32.mrf.mxu0
        %705 = vdwg.mxu0
        %706 = vmatprep.subr.mxu0 0.0
        %707 = vmatpush1.xpose.msra.mxu0 0.0
        %708 = vmatprep.subr.mxu0 0.0
        %709 = vmatpush1.xpose.msra.mxu0 0.0
        %710 = vmatprep.subr.mxu0 0.0
        %711 = vmatpush1.xpose.msra.mxu0 0.0
        %712 = vmatprep.subr.mxu0 0.0
        %713 = vmatpush1.xpose.msra.mxu0 0.0
        %714 = vmatprep.subr.mxu0 0.0
        %715 = vmatpush1.xpose.msra.mxu0 0.0
        %716 = vmatprep.subr.mxu0 0.0
        %717 = vmatpush1.xpose.msra.mxu0 0.0
        %718 = vmatprep.subr.mxu0 0.0
        %719 = vmatpush1.xpose.msra.mxu0 0.0
        %720 = vmatprep.subr.mxu0 0.0
        %721 = vmatpush1.xpose.msra.mxu0 0.0
        %722 = vmatprep.subr.mxu0 0.0
        %723 = vmatpush1.xpose.msra.mxu0 0.0
        %724 = vmatprep.subr.mxu0 0.0
        %725 = vmatpush1.xpose.msra.mxu0 0.0
        %726 = vmatprep.subr.mxu0 0.0
        %727 = vmatpush1.xpose.msra.mxu0 0.0
        %728 = vmatprep.subr.mxu0 0.0
        %729 = vmatpush1.xpose.msra.mxu0 0.0
        %730 = vmatprep.subr.mxu0 0.0
        %731 = vmatpush1.xpose.msra.mxu0 0.0
        %732 = vmatprep.subr.mxu0 0.0
        %733 = vmatpush1.xpose.msra.mxu0 0.0
        %734 = vmatprep.subr.mxu0 0.0
        %735 = vmatpush1.xpose.msra.mxu0 0.0
        %736 = vmatprep.subr.mxu0 0.0
        %v737 = vand.u32 %v330, 4294901760
        %738 = vmatpush1.xpose.msra.mxu0 %v737
        %739 = vmatprep.subr.mxu0 0.0
        %740 = vmatpush2.xpose.msra.mxu0 0.0
        %741 = vmatprep.subr.mxu0 0.0
        %742 = vmatpush2.xpose.msra.mxu0 0.0
        %743 = vmatprep.subr.mxu0 0.0
        %744 = vmatpush2.xpose.msra.mxu0 0.0
        %745 = vmatprep.subr.mxu0 0.0
        %746 = vmatpush2.xpose.msra.mxu0 0.0
        %747 = vmatprep.subr.mxu0 0.0
        %748 = vmatpush2.xpose.msra.mxu0 0.0
        %749 = vmatprep.subr.mxu0 0.0
        %750 = vmatpush2.xpose.msra.mxu0 0.0
        %751 = vmatprep.subr.mxu0 0.0
        %752 = vmatpush2.xpose.msra.mxu0 0.0
        %753 = vmatprep.subr.mxu0 0.0
        %754 = vmatpush2.xpose.msra.mxu0 0.0
        %755 = vmatprep.subr.mxu0 0.0
        %756 = vmatpush2.xpose.msra.mxu0 0.0
        %757 = vmatprep.subr.mxu0 0.0
        %758 = vmatpush2.xpose.msra.mxu0 0.0
        %759 = vmatprep.subr.mxu0 0.0
        %760 = vmatpush2.xpose.msra.mxu0 0.0
        %761 = vmatprep.subr.mxu0 0.0
        %762 = vmatpush2.xpose.msra.mxu0 0.0
        %763 = vmatprep.subr.mxu0 0.0
        %764 = vmatpush2.xpose.msra.mxu0 0.0
        %765 = vmatprep.subr.mxu0 0.0
        %766 = vmatpush2.xpose.msra.mxu0 0.0
        %767 = vmatprep.subr.mxu0 0.0
        %768 = vmatpush2.xpose.msra.mxu0 0.0
        %769 = vmatprep.subr.mxu0 0.0
        %770 = vmatpush2.xpose.msra.mxu0 0.0
        %771 = vmatprep.mubr.f32.mxu0 0.0
        %v772 = vand.u32 %v327, 4294901760
        %773 = vmatmul.mubr.f32.gmra.mxu0 %v772
        %v774 = vpop.f32.mrf.mxu0
        %v775 = vadd.f32 %v703, %v774
        %v776 = vpop.f32.mrf.mxu0
        %777 = vdwg.mxu0
        %v779 = vsel %vm299, %v323, 0
        %v782 = vsel %vm299, %v325, 0
        %784 = vmatprep.subr.mxu0 0.0
        %785 = vmatpush1.xpose.msra.mxu0 0.0
        %786 = vmatprep.subr.mxu0 0.0
        %787 = vmatpush1.xpose.msra.mxu0 0.0
        %788 = vmatprep.subr.mxu0 0.0
        %789 = vmatpush1.xpose.msra.mxu0 0.0
        %790 = vmatprep.subr.mxu0 0.0
        %791 = vmatpush1.xpose.msra.mxu0 0.0
        %792 = vmatprep.subr.mxu0 0.0
        %793 = vmatpush1.xpose.msra.mxu0 0.0
        %794 = vmatprep.subr.mxu0 0.0
        %795 = vmatpush1.xpose.msra.mxu0 0.0
        %796 = vmatprep.subr.mxu0 0.0
        %797 = vmatpush1.xpose.msra.mxu0 0.0
        %798 = vmatprep.subr.mxu0 0.0
        %799 = vmatpush1.xpose.msra.mxu0 0.0
        %800 = vmatprep.subr.mxu0 0.0
        %801 = vmatpush1.xpose.msra.mxu0 0.0
        %802 = vmatprep.subr.mxu0 0.0
        %803 = vmatpush1.xpose.msra.mxu0 0.0
        %804 = vmatprep.subr.mxu0 0.0
        %805 = vmatpush1.xpose.msra.mxu0 0.0
        %806 = vmatprep.subr.mxu0 0.0
        %807 = vmatpush1.xpose.msra.mxu0 0.0
        %808 = vmatprep.subr.mxu0 0.0
        %809 = vmatpush1.xpose.msra.mxu0 0.0
        %810 = vmatprep.subr.mxu0 0.0
        %811 = vmatpush1.xpose.msra.mxu0 0.0
        %812 = vmatprep.subr.mxu0 0.0
        %813 = vmatpush1.xpose.msra.mxu0 0.0
        %814 = vmatprep.subr.mxu0 0.0
        %v815 = vand.u32 %v782, 4294901760
        %816 = vmatpush1.xpose.msra.mxu0 %v815
        %817 = vmatprep.subr.mxu0 0.0
        %818 = vmatpush2.xpose.msra.mxu0 0.0
        %819 = vmatprep.subr.mxu0 0.0
        %820 = vmatpush2.xpose.msra.mxu0 0.0
        %821 = vmatprep.subr.mxu0 0.0
        %822 = vmatpush2.xpose.msra.mxu0 0.0
        %823 = vmatprep.subr.mxu0 0.0
        %824 = vmatpush2.xpose.msra.mxu0 0.0
        %825 = vmatprep.subr.mxu0 0.0
        %826 = vmatpush2.xpose.msra.mxu0 0.0
        %827 = vmatprep.subr.mxu0 0.0
        %828 = vmatpush2.xpose.msra.mxu0 0.0
        %829 = vmatprep.subr.mxu0 0.0
        %830 = vmatpush2.xpose.msra.mxu0 0.0
        %831 = vmatprep.subr.mxu0 0.0
        %832 = vmatpush2.xpose.msra.mxu0 0.0
        %833 = vmatprep.subr.mxu0 0.0
        %834 = vmatpush2.xpose.msra.mxu0 0.0
        %835 = vmatprep.subr.mxu0 0.0
        %836 = vmatpush2.xpose.msra.mxu0 0.0
        %837 = vmatprep.subr.mxu0 0.0
        %838 = vmatpush2.xpose.msra.mxu0 0.0
        %839 = vmatprep.subr.mxu0 0.0
        %840 = vmatpush2.xpose.msra.mxu0 0.0
        %841 = vmatprep.subr.mxu0 0.0
        %842 = vmatpush2.xpose.msra.mxu0 0.0
        %843 = vmatprep.subr.mxu0 0.0
        %844 = vmatpush2.xpose.msra.mxu0 0.0
        %845 = vmatprep.subr.mxu0 0.0
        %846 = vmatpush2.xpose.msra.mxu0 0.0
        %847 = vmatprep.subr.mxu0 0.0
        %848 = vmatpush2.xpose.msra.mxu0 0.0
        %849 = vmatprep.mubr.f32.mxu0 0.0
        %v850 = vand.u32 %v779, 4294901760
        %v851 = vsub.f32 %v779, %v850
        %v852 = vand.u32 %v851, 4294901760
        %v853 = vsub.f32 %v851, %v852
        %v854 = vand.u32 %v853, 4294901760
        %855 = vmatmul.mubr.f32.gmra.mxu0 %v854
        %v856 = vpop.f32.mrf.mxu0
        %v857 = vadd.f32 0.0, %v856
        %v858 = vpop.f32.mrf.mxu0
        %859 = vdwg.mxu0
        %860 = vmatprep.subr.mxu0 0.0
        %861 = vmatpush1.xpose.msra.mxu0 0.0
        %862 = vmatprep.subr.mxu0 0.0
        %863 = vmatpush1.xpose.msra.mxu0 0.0
        %864 = vmatprep.subr.mxu0 0.0
        %865 = vmatpush1.xpose.msra.mxu0 0.0
        %866 = vmatprep.subr.mxu0 0.0
        %867 = vmatpush1.xpose.msra.mxu0 0.0
        %868 = vmatprep.subr.mxu0 0.0
        %869 = vmatpush1.xpose.msra.mxu0 0.0
        %870 = vmatprep.subr.mxu0 0.0
        %871 = vmatpush1.xpose.msra.mxu0 0.0
        %872 = vmatprep.subr.mxu0 0.0
        %873 = vmatpush1.xpose.msra.mxu0 0.0
        %874 = vmatprep.subr.mxu0 0.0
        %875 = vmatpush1.xpose.msra.mxu0 0.0
        %876 = vmatprep.subr.mxu0 0.0
        %877 = vmatpush1.xpose.msra.mxu0 0.0
        %878 = vmatprep.subr.mxu0 0.0
        %879 = vmatpush1.xpose.msra.mxu0 0.0
        %880 = vmatprep.subr.mxu0 0.0
        %881 = vmatpush1.xpose.msra.mxu0 0.0
        %882 = vmatprep.subr.mxu0 0.0
        %883 = vmatpush1.xpose.msra.mxu0 0.0
        %884 = vmatprep.subr.mxu0 0.0
        %885 = vmatpush1.xpose.msra.mxu0 0.0
        %886 = vmatprep.subr.mxu0 0.0
        %887 = vmatpush1.xpose.msra.mxu0 0.0
        %888 = vmatprep.subr.mxu0 0.0
        %889 = vmatpush1.xpose.msra.mxu0 0.0
        %890 = vmatprep.subr.mxu0 0.0
        %v891 = vand.u32 %v782, 4294901760
        %v892 = vsub.f32 %v782, %v891
        %v893 = vand.u32 %v892, 4294901760
        %v894 = vsub.f32 %v892, %v893
        %v895 = vand.u32 %v894, 4294901760
        %896 = vmatpush1.xpose.msra.mxu0 %v895
        %897 = vmatprep.subr.mxu0 0.0
        %898 = vmatpush2.xpose.msra.mxu0 0.0
        %899 = vmatprep.subr.mxu0 0.0
        %900 = vmatpush2.xpose.msra.mxu0 0.0
        %901 = vmatprep.subr.mxu0 0.0
        %902 = vmatpush2.xpose.msra.mxu0 0.0
        %903 = vmatprep.subr.mxu0 0.0
        %904 = vmatpush2.xpose.msra.mxu0 0.0
        %905 = vmatprep.subr.mxu0 0.0
        %906 = vmatpush2.xpose.msra.mxu0 0.0
        %907 = vmatprep.subr.mxu0 0.0
        %908 = vmatpush2.xpose.msra.mxu0 0.0
        %909 = vmatprep.subr.mxu0 0.0
        %910 = vmatpush2.xpose.msra.mxu0 0.0
        %911 = vmatprep.subr.mxu0 0.0
        %912 = vmatpush2.xpose.msra.mxu0 0.0
        %913 = vmatprep.subr.mxu0 0.0
        %914 = vmatpush2.xpose.msra.mxu0 0.0
        %915 = vmatprep.subr.mxu0 0.0
        %916 = vmatpush2.xpose.msra.mxu0 0.0
        %917 = vmatprep.subr.mxu0 0.0
        %918 = vmatpush2.xpose.msra.mxu0 0.0
        %919 = vmatprep.subr.mxu0 0.0
        %920 = vmatpush2.xpose.msra.mxu0 0.0
        %921 = vmatprep.subr.mxu0 0.0
        %922 = vmatpush2.xpose.msra.mxu0 0.0
        %923 = vmatprep.subr.mxu0 0.0
        %924 = vmatpush2.xpose.msra.mxu0 0.0
        %925 = vmatprep.subr.mxu0 0.0
        %926 = vmatpush2.xpose.msra.mxu0 0.0
        %927 = vmatprep.subr.mxu0 0.0
        %928 = vmatpush2.xpose.msra.mxu0 0.0
        %929 = vmatprep.mubr.f32.mxu0 0.0
        %v930 = vand.u32 %v779, 4294901760
        %931 = vmatmul.mubr.f32.gmra.mxu0 %v930
        %v932 = vpop.f32.mrf.mxu0
        %v933 = vadd.f32 %v857, %v932
        %v934 = vpop.f32.mrf.mxu0
        %935 = vdwg.mxu0
        %936 = vmatprep.subr.mxu0 0.0
        %937 = vmatpush1.xpose.msra.mxu0 0.0
        %938 = vmatprep.subr.mxu0 0.0
        %939 = vmatpush1.xpose.msra.mxu0 0.0
        %940 = vmatprep.subr.mxu0 0.0
        %941 = vmatpush1.xpose.msra.mxu0 0.0
        %942 = vmatprep.subr.mxu0 0.0
        %943 = vmatpush1.xpose.msra.mxu0 0.0
        %944 = vmatprep.subr.mxu0 0.0
        %945 = vmatpush1.xpose.msra.mxu0 0.0
        %946 = vmatprep.subr.mxu0 0.0
        %947 = vmatpush1.xpose.msra.mxu0 0.0
        %948 = vmatprep.subr.mxu0 0.0
        %949 = vmatpush1.xpose.msra.mxu0 0.0
        %950 = vmatprep.subr.mxu0 0.0
        %951 = vmatpush1.xpose.msra.mxu0 0.0
        %952 = vmatprep.subr.mxu0 0.0
        %953 = vmatpush1.xpose.msra.mxu0 0.0
        %954 = vmatprep.subr.mxu0 0.0
        %955 = vmatpush1.xpose.msra.mxu0 0.0
        %956 = vmatprep.subr.mxu0 0.0
        %957 = vmatpush1.xpose.msra.mxu0 0.0
        %958 = vmatprep.subr.mxu0 0.0
        %959 = vmatpush1.xpose.msra.mxu0 0.0
        %960 = vmatprep.subr.mxu0 0.0
        %961 = vmatpush1.xpose.msra.mxu0 0.0
        %962 = vmatprep.subr.mxu0 0.0
        %963 = vmatpush1.xpose.msra.mxu0 0.0
        %964 = vmatprep.subr.mxu0 0.0
        %965 = vmatpush1.xpose.msra.mxu0 0.0
        %966 = vmatprep.subr.mxu0 0.0
        %v967 = vand.u32 %v782, 4294901760
        %v968 = vsub.f32 %v782, %v967
        %969 = vmatpush1.xpose.msra.mxu0 %v968
        %970 = vmatprep.subr.mxu0 0.0
        %971 = vmatpush2.xpose.msra.mxu0 0.0
        %972 = vmatprep.subr.mxu0 0.0
        %973 = vmatpush2.xpose.msra.mxu0 0.0
        %974 = vmatprep.subr.mxu0 0.0
        %975 = vmatpush2.xpose.msra.mxu0 0.0
        %976 = vmatprep.subr.mxu0 0.0
        %977 = vmatpush2.xpose.msra.mxu0 0.0
        %978 = vmatprep.subr.mxu0 0.0
        %979 = vmatpush2.xpose.msra.mxu0 0.0
        %980 = vmatprep.subr.mxu0 0.0
        %981 = vmatpush2.xpose.msra.mxu0 0.0
        %982 = vmatprep.subr.mxu0 0.0
        %983 = vmatpush2.xpose.msra.mxu0 0.0
        %984 = vmatprep.subr.mxu0 0.0
        %985 = vmatpush2.xpose.msra.mxu0 0.0
        %986 = vmatprep.subr.mxu0 0.0
        %987 = vmatpush2.xpose.msra.mxu0 0.0
        %988 = vmatprep.subr.mxu0 0.0
        %989 = vmatpush2.xpose.msra.mxu0 0.0
        %990 = vmatprep.subr.mxu0 0.0
        %991 = vmatpush2.xpose.msra.mxu0 0.0
        %992 = vmatprep.subr.mxu0 0.0
        %993 = vmatpush2.xpose.msra.mxu0 0.0
        %994 = vmatprep.subr.mxu0 0.0
        %995 = vmatpush2.xpose.msra.mxu0 0.0
        %996 = vmatprep.subr.mxu0 0.0
        %997 = vmatpush2.xpose.msra.mxu0 0.0
        %998 = vmatprep.subr.mxu0 0.0
        %999 = vmatpush2.xpose.msra.mxu0 0.0
        %1000 = vmatprep.subr.mxu0 0.0
        %1001 = vmatpush2.xpose.msra.mxu0 0.0
        %1002 = vmatprep.mubr.f32.mxu0 0.0
        %v1003 = vand.u32 %v779, 4294901760
        %v1004 = vsub.f32 %v779, %v1003
        %1005 = vmatmul.mubr.f32.gmra.mxu0 %v1004
        %v1006 = vpop.f32.mrf.mxu0
        %v1007 = vadd.f32 %v933, %v1006
        %v1008 = vpop.f32.mrf.mxu0
        %1009 = vdwg.mxu0
        %1010 = vmatprep.subr.mxu0 0.0
        %1011 = vmatpush1.xpose.msra.mxu0 0.0
        %1012 = vmatprep.subr.mxu0 0.0
        %1013 = vmatpush1.xpose.msra.mxu0 0.0
        %1014 = vmatprep.subr.mxu0 0.0
        %1015 = vmatpush1.xpose.msra.mxu0 0.0
        %1016 = vmatprep.subr.mxu0 0.0
        %1017 = vmatpush1.xpose.msra.mxu0 0.0
        %1018 = vmatprep.subr.mxu0 0.0
        %1019 = vmatpush1.xpose.msra.mxu0 0.0
        %1020 = vmatprep.subr.mxu0 0.0
        %1021 = vmatpush1.xpose.msra.mxu0 0.0
        %1022 = vmatprep.subr.mxu0 0.0
        %1023 = vmatpush1.xpose.msra.mxu0 0.0
        %1024 = vmatprep.subr.mxu0 0.0
        %1025 = vmatpush1.xpose.msra.mxu0 0.0
        %1026 = vmatprep.subr.mxu0 0.0
        %1027 = vmatpush1.xpose.msra.mxu0 0.0
        %1028 = vmatprep.subr.mxu0 0.0
        %1029 = vmatpush1.xpose.msra.mxu0 0.0
        %1030 = vmatprep.subr.mxu0 0.0
        %1031 = vmatpush1.xpose.msra.mxu0 0.0
        %1032 = vmatprep.subr.mxu0 0.0
        %1033 = vmatpush1.xpose.msra.mxu0 0.0
        %1034 = vmatprep.subr.mxu0 0.0
        %1035 = vmatpush1.xpose.msra.mxu0 0.0
        %1036 = vmatprep.subr.mxu0 0.0
        %1037 = vmatpush1.xpose.msra.mxu0 0.0
        %1038 = vmatprep.subr.mxu0 0.0
        %1039 = vmatpush1.xpose.msra.mxu0 0.0
        %1040 = vmatprep.subr.mxu0 0.0
        %v1041 = vand.u32 %v782, 4294901760
        %1042 = vmatpush1.xpose.msra.mxu0 %v1041
        %1043 = vmatprep.subr.mxu0 0.0
        %1044 = vmatpush2.xpose.msra.mxu0 0.0
        %1045 = vmatprep.subr.mxu0 0.0
        %1046 = vmatpush2.xpose.msra.mxu0 0.0
        %1047 = vmatprep.subr.mxu0 0.0
        %1048 = vmatpush2.xpose.msra.mxu0 0.0
        %1049 = vmatprep.subr.mxu0 0.0
        %1050 = vmatpush2.xpose.msra.mxu0 0.0
        %1051 = vmatprep.subr.mxu0 0.0
        %1052 = vmatpush2.xpose.msra.mxu0 0.0
        %1053 = vmatprep.subr.mxu0 0.0
        %1054 = vmatpush2.xpose.msra.mxu0 0.0
        %1055 = vmatprep.subr.mxu0 0.0
        %1056 = vmatpush2.xpose.msra.mxu0 0.0
        %1057 = vmatprep.subr.mxu0 0.0
        %1058 = vmatpush2.xpose.msra.mxu0 0.0
        %1059 = vmatprep.subr.mxu0 0.0
        %1060 = vmatpush2.xpose.msra.mxu0 0.0
        %1061 = vmatprep.subr.mxu0 0.0
        %1062 = vmatpush2.xpose.msra.mxu0 0.0
        %1063 = vmatprep.subr.mxu0 0.0
        %1064 = vmatpush2.xpose.msra.mxu0 0.0
        %1065 = vmatprep.subr.mxu0 0.0
        %1066 = vmatpush2.xpose.msra.mxu0 0.0
        %1067 = vmatprep.subr.mxu0 0.0
        %1068 = vmatpush2.xpose.msra.mxu0 0.0
        %1069 = vmatprep.subr.mxu0 0.0
        %1070 = vmatpush2.xpose.msra.mxu0 0.0
        %1071 = vmatprep.subr.mxu0 0.0
        %1072 = vmatpush2.xpose.msra.mxu0 0.0
        %1073 = vmatprep.subr.mxu0 0.0
        %1074 = vmatpush2.xpose.msra.mxu0 0.0
        %1075 = vmatprep.mubr.f32.mxu0 0.0
        %v1076 = vand.u32 %v779, 4294901760
        %v1077 = vsub.f32 %v779, %v1076
        %v1078 = vand.u32 %v1077, 4294901760
        %1079 = vmatmul.mubr.f32.gmra.mxu0 %v1078
        %v1080 = vpop.f32.mrf.mxu0
        %v1081 = vadd.f32 %v1007, %v1080
        %v1082 = vpop.f32.mrf.mxu0
        %1083 = vdwg.mxu0
        %1084 = vmatprep.subr.mxu0 0.0
        %1085 = vmatpush1.xpose.msra.mxu0 0.0
        %1086 = vmatprep.subr.mxu0 0.0
        %1087 = vmatpush1.xpose.msra.mxu0 0.0
        %1088 = vmatprep.subr.mxu0 0.0
        %1089 = vmatpush1.xpose.msra.mxu0 0.0
        %1090 = vmatprep.subr.mxu0 0.0
        %1091 = vmatpush1.xpose.msra.mxu0 0.0
        %1092 = vmatprep.subr.mxu0 0.0
        %1093 = vmatpush1.xpose.msra.mxu0 0.0
        %1094 = vmatprep.subr.mxu0 0.0
        %1095 = vmatpush1.xpose.msra.mxu0 0.0
        %1096 = vmatprep.subr.mxu0 0.0
        %1097 = vmatpush1.xpose.msra.mxu0 0.0
        %1098 = vmatprep.subr.mxu0 0.0
        %1099 = vmatpush1.xpose.msra.mxu0 0.0
        %1100 = vmatprep.subr.mxu0 0.0
        %1101 = vmatpush1.xpose.msra.mxu0 0.0
        %1102 = vmatprep.subr.mxu0 0.0
        %1103 = vmatpush1.xpose.msra.mxu0 0.0
        %1104 = vmatprep.subr.mxu0 0.0
        %1105 = vmatpush1.xpose.msra.mxu0 0.0
        %1106 = vmatprep.subr.mxu0 0.0
        %1107 = vmatpush1.xpose.msra.mxu0 0.0
        %1108 = vmatprep.subr.mxu0 0.0
        %1109 = vmatpush1.xpose.msra.mxu0 0.0
        %1110 = vmatprep.subr.mxu0 0.0
        %1111 = vmatpush1.xpose.msra.mxu0 0.0
        %1112 = vmatprep.subr.mxu0 0.0
        %1113 = vmatpush1.xpose.msra.mxu0 0.0
        %1114 = vmatprep.subr.mxu0 0.0
        %v1115 = vand.u32 %v782, 4294901760
        %v1116 = vsub.f32 %v782, %v1115
        %v1117 = vand.u32 %v1116, 4294901760
        %1118 = vmatpush1.xpose.msra.mxu0 %v1117
        %1119 = vmatprep.subr.mxu0 0.0
        %1120 = vmatpush2.xpose.msra.mxu0 0.0
        %1121 = vmatprep.subr.mxu0 0.0
        %1122 = vmatpush2.xpose.msra.mxu0 0.0
        %1123 = vmatprep.subr.mxu0 0.0
        %1124 = vmatpush2.xpose.msra.mxu0 0.0
        %1125 = vmatprep.subr.mxu0 0.0
        %1126 = vmatpush2.xpose.msra.mxu0 0.0
        %1127 = vmatprep.subr.mxu0 0.0
        %1128 = vmatpush2.xpose.msra.mxu0 0.0
        %1129 = vmatprep.subr.mxu0 0.0
        %1130 = vmatpush2.xpose.msra.mxu0 0.0
        %1131 = vmatprep.subr.mxu0 0.0
        %1132 = vmatpush2.xpose.msra.mxu0 0.0
        %1133 = vmatprep.subr.mxu0 0.0
        %1134 = vmatpush2.xpose.msra.mxu0 0.0
        %1135 = vmatprep.subr.mxu0 0.0
        %1136 = vmatpush2.xpose.msra.mxu0 0.0
        %1137 = vmatprep.subr.mxu0 0.0
        %1138 = vmatpush2.xpose.msra.mxu0 0.0
        %1139 = vmatprep.subr.mxu0 0.0
        %1140 = vmatpush2.xpose.msra.mxu0 0.0
        %1141 = vmatprep.subr.mxu0 0.0
        %1142 = vmatpush2.xpose.msra.mxu0 0.0
        %1143 = vmatprep.subr.mxu0 0.0
        %1144 = vmatpush2.xpose.msra.mxu0 0.0
        %1145 = vmatprep.subr.mxu0 0.0
        %1146 = vmatpush2.xpose.msra.mxu0 0.0
        %1147 = vmatprep.subr.mxu0 0.0
        %1148 = vmatpush2.xpose.msra.mxu0 0.0
        %1149 = vmatprep.subr.mxu0 0.0
        %1150 = vmatpush2.xpose.msra.mxu0 0.0
        %1151 = vmatprep.mubr.f32.mxu0 0.0
        %v1152 = vand.u32 %v779, 4294901760
        %1153 = vmatmul.mubr.f32.gmra.mxu0 %v1152
        %v1154 = vpop.f32.mrf.mxu0
        %v1155 = vadd.f32 %v1081, %v1154
        %v1156 = vpop.f32.mrf.mxu0
        %1157 = vdwg.mxu0
        %1158 = vmatprep.subr.mxu0 0.0
        %1159 = vmatpush1.xpose.msra.mxu0 0.0
        %1160 = vmatprep.subr.mxu0 0.0
        %1161 = vmatpush1.xpose.msra.mxu0 0.0
        %1162 = vmatprep.subr.mxu0 0.0
        %1163 = vmatpush1.xpose.msra.mxu0 0.0
        %1164 = vmatprep.subr.mxu0 0.0
        %1165 = vmatpush1.xpose.msra.mxu0 0.0
        %1166 = vmatprep.subr.mxu0 0.0
        %1167 = vmatpush1.xpose.msra.mxu0 0.0
        %1168 = vmatprep.subr.mxu0 0.0
        %1169 = vmatpush1.xpose.msra.mxu0 0.0
        %1170 = vmatprep.subr.mxu0 0.0
        %1171 = vmatpush1.xpose.msra.mxu0 0.0
        %1172 = vmatprep.subr.mxu0 0.0
        %1173 = vmatpush1.xpose.msra.mxu0 0.0
        %1174 = vmatprep.subr.mxu0 0.0
        %1175 = vmatpush1.xpose.msra.mxu0 0.0
        %1176 = vmatprep.subr.mxu0 0.0
        %1177 = vmatpush1.xpose.msra.mxu0 0.0
        %1178 = vmatprep.subr.mxu0 0.0
        %1179 = vmatpush1.xpose.msra.mxu0 0.0
        %1180 = vmatprep.subr.mxu0 0.0
        %1181 = vmatpush1.xpose.msra.mxu0 0.0
        %1182 = vmatprep.subr.mxu0 0.0
        %1183 = vmatpush1.xpose.msra.mxu0 0.0
        %1184 = vmatprep.subr.mxu0 0.0
        %1185 = vmatpush1.xpose.msra.mxu0 0.0
        %1186 = vmatprep.subr.mxu0 0.0
        %1187 = vmatpush1.xpose.msra.mxu0 0.0
        %1188 = vmatprep.subr.mxu0 0.0
        %v1189 = vand.u32 %v782, 4294901760
        %1190 = vmatpush1.xpose.msra.mxu0 %v1189
        %1191 = vmatprep.subr.mxu0 0.0
        %1192 = vmatpush2.xpose.msra.mxu0 0.0
        %1193 = vmatprep.subr.mxu0 0.0
        %1194 = vmatpush2.xpose.msra.mxu0 0.0
        %1195 = vmatprep.subr.mxu0 0.0
        %1196 = vmatpush2.xpose.msra.mxu0 0.0
        %1197 = vmatprep.subr.mxu0 0.0
        %1198 = vmatpush2.xpose.msra.mxu0 0.0
        %1199 = vmatprep.subr.mxu0 0.0
        %1200 = vmatpush2.xpose.msra.mxu0 0.0
        %1201 = vmatprep.subr.mxu0 0.0
        %1202 = vmatpush2.xpose.msra.mxu0 0.0
        %1203 = vmatprep.subr.mxu0 0.0
        %1204 = vmatpush2.xpose.msra.mxu0 0.0
        %1205 = vmatprep.subr.mxu0 0.0
        %1206 = vmatpush2.xpose.msra.mxu0 0.0
        %1207 = vmatprep.subr.mxu0 0.0
        %1208 = vmatpush2.xpose.msra.mxu0 0.0
        %1209 = vmatprep.subr.mxu0 0.0
        %1210 = vmatpush2.xpose.msra.mxu0 0.0
        %1211 = vmatprep.subr.mxu0 0.0
        %1212 = vmatpush2.xpose.msra.mxu0 0.0
        %1213 = vmatprep.subr.mxu0 0.0
        %1214 = vmatpush2.xpose.msra.mxu0 0.0
        %1215 = vmatprep.subr.mxu0 0.0
        %1216 = vmatpush2.xpose.msra.mxu0 0.0
        %1217 = vmatprep.subr.mxu0 0.0
        %1218 = vmatpush2.xpose.msra.mxu0 0.0
        %1219 = vmatprep.subr.mxu0 0.0
        %1220 = vmatpush2.xpose.msra.mxu0 0.0
        %1221 = vmatprep.subr.mxu0 0.0
        %1222 = vmatpush2.xpose.msra.mxu0 0.0
        %1223 = vmatprep.mubr.f32.mxu0 0.0
        %v1224 = vand.u32 %v779, 4294901760
        %1225 = vmatmul.mubr.f32.gmra.mxu0 %v1224
        %v1226 = vpop.f32.mrf.mxu0
        %v1227 = vadd.f32 %v1155, %v1226
        %v1228 = vpop.f32.mrf.mxu0
        %1229 = vdwg.mxu0
        %v1230 = vsub.f32 %v775, 1.0
        %v1231 = vsub.f32 %v1227, 1.0
        %v1232 = vmul.f32 %v1230, %v1230
        %v1233 = vmul.f32 %v1231, %v1231
        %v1234 = vmul.f32 %v1232, -500000.0
        %v1235 = vmul.f32 %v1233, -500000.0
        %v1236 = vmul.f32 %v1234, 1.442695
        %v1237 = vpow.pop %v1236
        %v1238 = vmul.f32 %v1235, 1.442695
        %v1239 = vpow.pop %v1238
        %vm1240 = vcmask 64512
        %v1241 = vsel %vm1240, %v1237, 0.0
        %1242 = vadd.xlane.f32.xlu0 %v1241
        %v1243 = vpop.xlane.xlu0 %1242
        %v1244 = vsel %vm1240, %v1239, 0.0
        %1245 = vadd.xlane.f32.xlu0 %v1244
        %v1246 = vpop.xlane.xlu0 %1245
        %v1247 = vmax.f32 %v1243, 1e-10
        %v1248 = vmax.f32 %v1246, 1e-10
        %v1249 = vlog2.pop %v1247
        %v1250 = vmul.f32 %v1249, 0.6931472
        %v1251 = vlog2.pop %v1248
        %v1252 = vmul.f32 %v1251, 0.6931472
        %v1253 = vmul.f32 %v1250, 0.01
        %v1254 = vmul.f32 %v1252, 0.01
        %v1255 = vrot.slane %v1253, 4
        %v1256 = vadd.f32 %v1253, %v1255
        %v1257 = vrot.slane %v1256, 2
        %v1258 = vadd.f32 %v1256, %v1257
        %v1259 = vrot.slane %v1258, 1
        %v1260 = vadd.f32 %v1258, %v1259
        %v1261 = vrot.slane %v1254, 4
        %v1262 = vadd.f32 %v1254, %v1261
        %v1263 = vrot.slane %v1262, 2
        %v1264 = vadd.f32 %v1262, %v1263
        %v1265 = vrot.slane %v1264, 1
        %v1266 = vadd.f32 %v1264, %v1265
        %v1267 = vmul.f32 %v775, -10.0
        %v1268 = vmul.f32 %v1227, -10.0
        %v1269 = vmul.f32 %v1267, 1.442695
        %v1270 = vpow.pop %v1269
        %v1271 = vmul.f32 %v1268, 1.442695
        %v1272 = vpow.pop %v1271
        %v1273 = vsub.f32 %v775, 0.95
        %v1274 = vsub.f32 %v1227, 0.95
        %v1275 = vmul.f32 %v1273, %v1273
        %v1276 = vmul.f32 %v1274, %v1274
        %v1277 = vmul.f32 %v1275, -50.0
        %v1278 = vmul.f32 %v1276, -50.0
        %v1279 = vmul.f32 %v1277, 1.442695
        %v1280 = vpow.pop %v1279
        %v1281 = vmul.f32 %v1278, 1.442695
        %v1282 = vpow.pop %v1281
        %v1283 = vsel %vm1240, %v1280, 0.0
        %1284 = vadd.xlane.f32.xlu0 %v1283
        %v1285 = vpop.xlane.xlu0 %1284
        %v1286 = vsel %vm1240, %v1282, 0.0
        %1287 = vadd.xlane.f32.xlu0 %v1286
        %v1288 = vpop.xlane.xlu0 %1287
        %v1289 = vmax.f32 %v1285, 1e-10
        %v1290 = vmax.f32 %v1288, 1e-10
        %v1291 = vlog2.pop %v1289
        %v1292 = vmul.f32 %v1291, 0.6931472
        %v1293 = vlog2.pop %v1290
        %v1294 = vmul.f32 %v1293, 0.6931472
        %v1295 = vmul.f32 %v1292, 0.01
        %v1296 = vmul.f32 %v1294, 0.01
        %v1297 = vrot.slane %v1295, 4
        %v1298 = vadd.f32 %v1295, %v1297
        %v1299 = vrot.slane %v1298, 2
        %v1300 = vadd.f32 %v1298, %v1299
        %v1301 = vrot.slane %v1300, 1
        %v1302 = vadd.f32 %v1300, %v1301
        %v1303 = vrot.slane %v1296, 4
        %v1304 = vadd.f32 %v1296, %v1303
        %v1305 = vrot.slane %v1304, 2
        %v1306 = vadd.f32 %v1304, %v1305
        %v1307 = vrot.slane %v1306, 1
        %v1308 = vadd.f32 %v1306, %v1307
        %v1309 = vmul.f32 %v1280, %v1270
        %v1310 = vmul.f32 %v1282, %v1272
        %v1311 = vmul.f32 %v1309, 8103.084
        %v1312 = vmul.f32 %v1310, 8103.084
        %v1313 = vsel %vm1240, %v1311, 0.0
        %1314 = vadd.xlane.f32.xlu0 %v1313
        %v1315 = vpop.xlane.xlu0 %1314
        %v1316 = vsel %vm1240, %v1312, 0.0
        %1317 = vadd.xlane.f32.xlu0 %v1316
        %v1318 = vpop.xlane.xlu0 %1317
        %v1319 = vmax.f32 %v1315, 1e-10
        %v1320 = vmax.f32 %v1318, 1e-10
        %v1321 = vlog2.pop %v1319
        %v1322 = vmul.f32 %v1321, 0.6931472
        %v1323 = vlog2.pop %v1320
        %v1324 = vmul.f32 %v1323, 0.6931472
        %v1325 = vmul.f32 %v1322, 0.01
        %v1326 = vmul.f32 %v1324, 0.01
        %v1327 = vrot.slane %v1325, 4
        %v1328 = vadd.f32 %v1325, %v1327
        %v1329 = vrot.slane %v1328, 2
        %v1330 = vadd.f32 %v1328, %v1329
        %v1331 = vrot.slane %v1330, 1
        %v1332 = vadd.f32 %v1330, %v1331
        %v1333 = vrot.slane %v1326, 4
        %v1334 = vadd.f32 %v1326, %v1333
        %v1335 = vrot.slane %v1334, 2
        %v1336 = vadd.f32 %v1334, %v1335
        %v1337 = vrot.slane %v1336, 1
        %v1338 = vadd.f32 %v1336, %v1337
        %v1339 = vmul.f32 %v1311, %v1270
        %v1340 = vmul.f32 %v1312, %v1272
        %v1341 = vmul.f32 %v1339, 2980.958
        %v1342 = vmul.f32 %v1340, 2980.958
        %v1343 = vsel %vm1240, %v1341, 0.0
        %1344 = vadd.xlane.f32.xlu0 %v1343
        %v1345 = vpop.xlane.xlu0 %1344
        %v1346 = vsel %vm1240, %v1342, 0.0
        %1347 = vadd.xlane.f32.xlu0 %v1346
        %v1348 = vpop.xlane.xlu0 %1347
        %v1349 = vmax.f32 %v1345, 1e-10
        %v1350 = vmax.f32 %v1348, 1e-10
        %v1351 = vlog2.pop %v1349
        %v1352 = vmul.f32 %v1351, 0.6931472
        %v1353 = vlog2.pop %v1350
        %v1354 = vmul.f32 %v1353, 0.6931472
        %v1355 = vmul.f32 %v1352, 0.01
        %v1356 = vmul.f32 %v1354, 0.01
        %v1357 = vrot.slane %v1355, 4
        %v1358 = vadd.f32 %v1355, %v1357
        %v1359 = vrot.slane %v1358, 2
        %v1360 = vadd.f32 %v1358, %v1359
        %v1361 = vrot.slane %v1360, 1
        %v1362 = vadd.f32 %v1360, %v1361
        %v1363 = vrot.slane %v1356, 4
        %v1364 = vadd.f32 %v1356, %v1363
        %v1365 = vrot.slane %v1364, 2
        %v1366 = vadd.f32 %v1364, %v1365
        %v1367 = vrot.slane %v1366, 1
        %v1368 = vadd.f32 %v1366, %v1367
        %v1369 = vmul.f32 %v1341, %v1270
        %v1370 = vmul.f32 %v1342, %v1272
        %v1371 = vmul.f32 %v1369, 1096.6332
        %v1372 = vmul.f32 %v1370, 1096.6332
        %v1373 = vsel %vm1240, %v1371, 0.0
        %1374 = vadd.xlane.f32.xlu0 %v1373
        %v1375 = vpop.xlane.xlu0 %1374
        %v1376 = vsel %vm1240, %v1372, 0.0
        %1377 = vadd.xlane.f32.xlu0 %v1376
        %v1378 = vpop.xlane.xlu0 %1377
        %v1379 = vmax.f32 %v1375, 1e-10
        %v1380 = vmax.f32 %v1378, 1e-10
        %v1381 = vlog2.pop %v1379
        %v1382 = vmul.f32 %v1381, 0.6931472
        %v1383 = vlog2.pop %v1380
        %v1384 = vmul.f32 %v1383, 0.6931472
        %v1385 = vmul.f32 %v1382, 0.01
        %v1386 = vmul.f32 %v1384, 0.01
        %v1387 = vrot.slane %v1385, 4
        %v1388 = vadd.f32 %v1385, %v1387
        %v1389 = vrot.slane %v1388, 2
        %v1390 = vadd.f32 %v1388, %v1389
        %v1391 = vrot.slane %v1390, 1
        %v1392 = vadd.f32 %v1390, %v1391
        %v1393 = vrot.slane %v1386, 4
        %v1394 = vadd.f32 %v1386, %v1393
        %v1395 = vrot.slane %v1394, 2
        %v1396 = vadd.f32 %v1394, %v1395
        %v1397 = vrot.slane %v1396, 1
        %v1398 = vadd.f32 %v1396, %v1397
        %v1399 = vmul.f32 %v1371, %v1270
        %v1400 = vmul.f32 %v1372, %v1272
        %v1401 = vmul.f32 %v1399, 403.4288
        %v1402 = vmul.f32 %v1400, 403.4288
        %v1403 = vsel %vm1240, %v1401, 0.0
        %1404 = vadd.xlane.f32.xlu0 %v1403
        %v1405 = vpop.xlane.xlu0 %1404
        %v1406 = vsel %vm1240, %v1402, 0.0
        %1407 = vadd.xlane.f32.xlu0 %v1406
        %v1408 = vpop.xlane.xlu0 %1407
        %v1409 = vmax.f32 %v1405, 1e-10
        %v1410 = vmax.f32 %v1408, 1e-10
        %v1411 = vlog2.pop %v1409
        %v1412 = vmul.f32 %v1411, 0.6931472
        %v1413 = vlog2.pop %v1410
        %v1414 = vmul.f32 %v1413, 0.6931472
        %v1415 = vmul.f32 %v1412, 0.01
        %v1416 = vmul.f32 %v1414, 0.01
        %v1417 = vrot.slane %v1415, 4
        %v1418 = vadd.f32 %v1415, %v1417
        %v1419 = vrot.slane %v1418, 2
        %v1420 = vadd.f32 %v1418, %v1419
        %v1421 = vrot.slane %v1420, 1
        %v1422 = vadd.f32 %v1420, %v1421
        %v1423 = vrot.slane %v1416, 4
        %v1424 = vadd.f32 %v1416, %v1423
        %v1425 = vrot.slane %v1424, 2
        %v1426 = vadd.f32 %v1424, %v1425
        %v1427 = vrot.slane %v1426, 1
        %v1428 = vadd.f32 %v1426, %v1427
        %v1429 = vsub.f32 %v775, 0.45
        %v1430 = vsub.f32 %v1227, 0.45
        %v1431 = vmul.f32 %v1429, %v1429
        %v1432 = vmul.f32 %v1430, %v1430
        %v1433 = vmul.f32 %v1431, -50.0
        %v1434 = vmul.f32 %v1432, -50.0
        %v1435 = vmul.f32 %v1433, 1.442695
        %v1436 = vpow.pop %v1435
        %v1437 = vmul.f32 %v1434, 1.442695
        %v1438 = vpow.pop %v1437
        %v1439 = vsel %vm1240, %v1436, 0.0
        %1440 = vadd.xlane.f32.xlu0 %v1439
        %v1441 = vpop.xlane.xlu0 %1440
        %v1442 = vsel %vm1240, %v1438, 0.0
        %1443 = vadd.xlane.f32.xlu0 %v1442
        %v1444 = vpop.xlane.xlu0 %1443
        %v1445 = vmax.f32 %v1441, 1e-10
        %v1446 = vmax.f32 %v1444, 1e-10
        %v1447 = vlog2.pop %v1445
        %v1448 = vmul.f32 %v1447, 0.6931472
        %v1449 = vlog2.pop %v1446
        %v1450 = vmul.f32 %v1449, 0.6931472
        %v1451 = vmul.f32 %v1448, 0.01
        %v1452 = vmul.f32 %v1450, 0.01
        %v1453 = vrot.slane %v1451, 4
        %v1454 = vadd.f32 %v1451, %v1453
        %v1455 = vrot.slane %v1454, 2
        %v1456 = vadd.f32 %v1454, %v1455
        %v1457 = vrot.slane %v1456, 1
        %v1458 = vadd.f32 %v1456, %v1457
        %v1459 = vrot.slane %v1452, 4
        %v1460 = vadd.f32 %v1452, %v1459
        %v1461 = vrot.slane %v1460, 2
        %v1462 = vadd.f32 %v1460, %v1461
        %v1463 = vrot.slane %v1462, 1
        %v1464 = vadd.f32 %v1462, %v1463
        %v1465 = vmul.f32 %v1436, %v1270
        %v1466 = vmul.f32 %v1438, %v1272
        %v1467 = vmul.f32 %v1465, 54.59815
        %v1468 = vmul.f32 %v1466, 54.59815
        %v1469 = vsel %vm1240, %v1467, 0.0
        %1470 = vadd.xlane.f32.xlu0 %v1469
        %v1471 = vpop.xlane.xlu0 %1470
        %v1472 = vsel %vm1240, %v1468, 0.0
        %1473 = vadd.xlane.f32.xlu0 %v1472
        %v1474 = vpop.xlane.xlu0 %1473
        %v1475 = vmax.f32 %v1471, 1e-10
        %v1476 = vmax.f32 %v1474, 1e-10
        %v1477 = vlog2.pop %v1475
        %v1478 = vmul.f32 %v1477, 0.6931472
        %v1479 = vlog2.pop %v1476
        %v1480 = vmul.f32 %v1479, 0.6931472
        %v1481 = vmul.f32 %v1478, 0.01
        %v1482 = vmul.f32 %v1480, 0.01
        %v1483 = vrot.slane %v1481, 4
        %v1484 = vadd.f32 %v1481, %v1483
        %v1485 = vrot.slane %v1484, 2
        %v1486 = vadd.f32 %v1484, %v1485
        %v1487 = vrot.slane %v1486, 1
        %v1488 = vadd.f32 %v1486, %v1487
        %v1489 = vrot.slane %v1482, 4
        %v1490 = vadd.f32 %v1482, %v1489
        %v1491 = vrot.slane %v1490, 2
        %v1492 = vadd.f32 %v1490, %v1491
        %v1493 = vrot.slane %v1492, 1
        %v1494 = vadd.f32 %v1492, %v1493
        %v1495 = vmul.f32 %v1467, %v1270
        %v1496 = vmul.f32 %v1468, %v1272
        %v1497 = vmul.f32 %v1495, 20.085537
        %v1498 = vmul.f32 %v1496, 20.085537
        %v1499 = vsel %vm1240, %v1497, 0.0
        %1500 = vadd.xlane.f32.xlu0 %v1499
        %v1501 = vpop.xlane.xlu0 %1500
        %v1502 = vsel %vm1240, %v1498, 0.0
        %1503 = vadd.xlane.f32.xlu0 %v1502
        %v1504 = vpop.xlane.xlu0 %1503
        %v1505 = vmax.f32 %v1501, 1e-10
        %v1506 = vmax.f32 %v1504, 1e-10
        %v1507 = vlog2.pop %v1505
        %v1508 = vmul.f32 %v1507, 0.6931472
        %v1509 = vlog2.pop %v1506
        %v1510 = vmul.f32 %v1509, 0.6931472
        %v1511 = vmul.f32 %v1508, 0.01
        %v1512 = vmul.f32 %v1510, 0.01
        %v1513 = vrot.slane %v1511, 4
        %v1514 = vadd.f32 %v1511, %v1513
        %v1515 = vrot.slane %v1514, 2
        %v1516 = vadd.f32 %v1514, %v1515
        %v1517 = vrot.slane %v1516, 1
        %v1518 = vadd.f32 %v1516, %v1517
        %v1519 = vrot.slane %v1512, 4
        %v1520 = vadd.f32 %v1512, %v1519
        %v1521 = vrot.slane %v1520, 2
        %v1522 = vadd.f32 %v1520, %v1521
        %v1523 = vrot.slane %v1522, 1
        %v1524 = vadd.f32 %v1522, %v1523
        %v1525 = vmul.f32 %v1497, %v1270
        %v1526 = vmul.f32 %v1498, %v1272
        %v1527 = vmul.f32 %v1525, 7.389056
        %v1528 = vmul.f32 %v1526, 7.389056
        %v1529 = vsel %vm1240, %v1527, 0.0
        %1530 = vadd.xlane.f32.xlu0 %v1529
        %v1531 = vpop.xlane.xlu0 %1530
        %v1532 = vsel %vm1240, %v1528, 0.0
        %1533 = vadd.xlane.f32.xlu0 %v1532
        %v1534 = vpop.xlane.xlu0 %1533
        %v1535 = vmax.f32 %v1531, 1e-10
        %v1536 = vmax.f32 %v1534, 1e-10
        %v1537 = vlog2.pop %v1535
        %v1538 = vmul.f32 %v1537, 0.6931472
        %v1539 = vlog2.pop %v1536
        %v1540 = vmul.f32 %v1539, 0.6931472
        %v1541 = vmul.f32 %v1538, 0.01
        %v1542 = vmul.f32 %v1540, 0.01
        %v1543 = vrot.slane %v1541, 4
        %v1544 = vadd.f32 %v1541, %v1543
        %v1545 = vrot.slane %v1544, 2
        %v1546 = vadd.f32 %v1544, %v1545
        %v1547 = vrot.slane %v1546, 1
        %v1548 = vadd.f32 %v1546, %v1547
        %v1549 = vrot.slane %v1542, 4
        %v1550 = vadd.f32 %v1542, %v1549
        %v1551 = vrot.slane %v1550, 2
        %v1552 = vadd.f32 %v1550, %v1551
        %v1553 = vrot.slane %v1552, 1
        %v1554 = vadd.f32 %v1552, %v1553
        %v1555 = vmul.f32 %v1527, %v1270
        %v1556 = vmul.f32 %v1528, %v1272
        %v1557 = vmul.f32 %v1555, 2.7182817
        %v1558 = vmul.f32 %v1556, 2.7182817
        %v1559 = vsel %vm1240, %v1557, 0.0
        %1560 = vadd.xlane.f32.xlu0 %v1559
        %v1561 = vpop.xlane.xlu0 %1560
        %v1562 = vsel %vm1240, %v1558, 0.0
        %1563 = vadd.xlane.f32.xlu0 %v1562
        %v1564 = vpop.xlane.xlu0 %1563
        %v1565 = vmax.f32 %v1561, 1e-10
        %v1566 = vmax.f32 %v1564, 1e-10
        %v1567 = vlog2.pop %v1565
        %v1568 = vmul.f32 %v1567, 0.6931472
        %v1569 = vlog2.pop %v1566
        %v1570 = vmul.f32 %v1569, 0.6931472
        %v1571 = vmul.f32 %v1568, 0.01
        %v1572 = vmul.f32 %v1570, 0.01
        %v1573 = vrot.slane %v1571, 4
        %v1574 = vadd.f32 %v1571, %v1573
        %v1575 = vrot.slane %v1574, 2
        %v1576 = vadd.f32 %v1574, %v1575
        %v1577 = vrot.slane %v1576, 1
        %v1578 = vadd.f32 %v1576, %v1577
        %v1579 = vrot.slane %v1572, 4
        %v1580 = vadd.f32 %v1572, %v1579
        %v1581 = vrot.slane %v1580, 2
        %v1582 = vadd.f32 %v1580, %v1581
        %v1583 = vrot.slane %v1582, 1
        %v1584 = vadd.f32 %v1582, %v1583
        %v1585 = vsub.f32 %v775, -0.05
        %v1586 = vsub.f32 %v1227, -0.05
        %v1587 = vmul.f32 %v1585, %v1585
        %v1588 = vmul.f32 %v1586, %v1586
        %v1589 = vmul.f32 %v1587, -50.0
        %v1590 = vmul.f32 %v1588, -50.0
        %v1591 = vmul.f32 %v1589, 1.442695
        %v1592 = vpow.pop %v1591
        %v1593 = vmul.f32 %v1590, 1.442695
        %v1594 = vpow.pop %v1593
        %v1595 = vsel %vm1240, %v1592, 0.0
        %1596 = vadd.xlane.f32.xlu0 %v1595
        %v1597 = vpop.xlane.xlu0 %1596
        %v1598 = vsel %vm1240, %v1594, 0.0
        %1599 = vadd.xlane.f32.xlu0 %v1598
        %v1600 = vpop.xlane.xlu0 %1599
        %v1601 = vmax.f32 %v1597, 1e-10
        %v1602 = vmax.f32 %v1600, 1e-10
        %v1603 = vlog2.pop %v1601
        %v1604 = vmul.f32 %v1603, 0.6931472
        %v1605 = vlog2.pop %v1602
        %v1606 = vmul.f32 %v1605, 0.6931472
        %v1607 = vmul.f32 %v1604, 0.01
        %v1608 = vmul.f32 %v1606, 0.01
        %v1609 = vrot.slane %v1607, 4
        %v1610 = vadd.f32 %v1607, %v1609
        %v1611 = vrot.slane %v1610, 2
        %v1612 = vadd.f32 %v1610, %v1611
        %v1613 = vrot.slane %v1612, 1
        %v1614 = vadd.f32 %v1612, %v1613
        %v1615 = vrot.slane %v1608, 4
        %v1616 = vadd.f32 %v1608, %v1615
        %v1617 = vrot.slane %v1616, 2
        %v1618 = vadd.f32 %v1616, %v1617
        %v1619 = vrot.slane %v1618, 1
        %v1620 = vadd.f32 %v1618, %v1619
        %v1621 = vmul.f32 %v1592, %v1270
        %v1622 = vmul.f32 %v1594, %v1272
        %v1623 = vmul.f32 %v1621, 0.36787945
        %v1624 = vmul.f32 %v1622, 0.36787945
        %v1625 = vsel %vm1240, %v1623, 0.0
        %1626 = vadd.xlane.f32.xlu0 %v1625
        %v1627 = vpop.xlane.xlu0 %1626
        %v1628 = vsel %vm1240, %v1624, 0.0
        %1629 = vadd.xlane.f32.xlu0 %v1628
        %v1630 = vpop.xlane.xlu0 %1629
        %v1631 = vmax.f32 %v1627, 1e-10
        %v1632 = vmax.f32 %v1630, 1e-10
        %v1633 = vlog2.pop %v1631
        %v1634 = vmul.f32 %v1633, 0.6931472
        %v1635 = vlog2.pop %v1632
        %v1636 = vmul.f32 %v1635, 0.6931472
        %v1637 = vmul.f32 %v1634, 0.01
        %v1638 = vmul.f32 %v1636, 0.01
        %v1639 = vrot.slane %v1637, 4
        %v1640 = vadd.f32 %v1637, %v1639
        %v1641 = vrot.slane %v1640, 2
        %v1642 = vadd.f32 %v1640, %v1641
        %v1643 = vrot.slane %v1642, 1
        %v1644 = vadd.f32 %v1642, %v1643
        %v1645 = vrot.slane %v1638, 4
        %v1646 = vadd.f32 %v1638, %v1645
        %v1647 = vrot.slane %v1646, 2
        %v1648 = vadd.f32 %v1646, %v1647
        %v1649 = vrot.slane %v1648, 1
        %v1650 = vadd.f32 %v1648, %v1649
        %v1651 = vmul.f32 %v1623, %v1270
        %v1652 = vmul.f32 %v1624, %v1272
        %v1653 = vmul.f32 %v1651, 0.13533528
        %v1654 = vmul.f32 %v1652, 0.13533528
        %v1655 = vsel %vm1240, %v1653, 0.0
        %1656 = vadd.xlane.f32.xlu0 %v1655
        %v1657 = vpop.xlane.xlu0 %1656
        %v1658 = vsel %vm1240, %v1654, 0.0
        %1659 = vadd.xlane.f32.xlu0 %v1658
        %v1660 = vpop.xlane.xlu0 %1659
        %v1661 = vmax.f32 %v1657, 1e-10
        %v1662 = vmax.f32 %v1660, 1e-10
        %v1663 = vlog2.pop %v1661
        %v1664 = vmul.f32 %v1663, 0.6931472
        %v1665 = vlog2.pop %v1662
        %v1666 = vmul.f32 %v1665, 0.6931472
        %v1667 = vmul.f32 %v1664, 0.01
        %v1668 = vmul.f32 %v1666, 0.01
        %v1669 = vrot.slane %v1667, 4
        %v1670 = vadd.f32 %v1667, %v1669
        %v1671 = vrot.slane %v1670, 2
        %v1672 = vadd.f32 %v1670, %v1671
        %v1673 = vrot.slane %v1672, 1
        %v1674 = vadd.f32 %v1672, %v1673
        %v1675 = vrot.slane %v1668, 4
        %v1676 = vadd.f32 %v1668, %v1675
        %v1677 = vrot.slane %v1676, 2
        %v1678 = vadd.f32 %v1676, %v1677
        %v1679 = vrot.slane %v1678, 1
        %v1680 = vadd.f32 %v1678, %v1679
        %v1681 = vmul.f32 %v1653, %v1270
        %v1682 = vmul.f32 %v1654, %v1272
        %v1683 = vmul.f32 %v1681, 0.049787067
        %v1684 = vmul.f32 %v1682, 0.049787067
        %v1685 = vsel %vm1240, %v1683, 0.0
        %1686 = vadd.xlane.f32.xlu0 %v1685
        %v1687 = vpop.xlane.xlu0 %1686
        %v1688 = vsel %vm1240, %v1684, 0.0
        %1689 = vadd.xlane.f32.xlu0 %v1688
        %v1690 = vpop.xlane.xlu0 %1689
        %v1691 = vmax.f32 %v1687, 1e-10
        %v1692 = vmax.f32 %v1690, 1e-10
        %v1693 = vlog2.pop %v1691
        %v1694 = vmul.f32 %v1693, 0.6931472
        %v1695 = vlog2.pop %v1692
        %v1696 = vmul.f32 %v1695, 0.6931472
        %v1697 = vmul.f32 %v1694, 0.01
        %v1698 = vmul.f32 %v1696, 0.01
        %v1699 = vrot.slane %v1697, 4
        %v1700 = vadd.f32 %v1697, %v1699
        %v1701 = vrot.slane %v1700, 2
        %v1702 = vadd.f32 %v1700, %v1701
        %v1703 = vrot.slane %v1702, 1
        %v1704 = vadd.f32 %v1702, %v1703
        %v1705 = vrot.slane %v1698, 4
        %v1706 = vadd.f32 %v1698, %v1705
        %v1707 = vrot.slane %v1706, 2
        %v1708 = vadd.f32 %v1706, %v1707
        %v1709 = vrot.slane %v1708, 1
        %v1710 = vadd.f32 %v1708, %v1709
        %v1711 = vmul.f32 %v1683, %v1270
        %v1712 = vmul.f32 %v1684, %v1272
        %v1713 = vmul.f32 %v1711, 0.01831564
        %v1714 = vmul.f32 %v1712, 0.01831564
        %v1715 = vsel %vm1240, %v1713, 0.0
        %1716 = vadd.xlane.f32.xlu0 %v1715
        %v1717 = vpop.xlane.xlu0 %1716
        %v1718 = vsel %vm1240, %v1714, 0.0
        %1719 = vadd.xlane.f32.xlu0 %v1718
        %v1720 = vpop.xlane.xlu0 %1719
        %v1721 = vmax.f32 %v1717, 1e-10
        %v1722 = vmax.f32 %v1720, 1e-10
        %v1723 = vlog2.pop %v1721
        %v1724 = vmul.f32 %v1723, 0.6931472
        %v1725 = vlog2.pop %v1722
        %v1726 = vmul.f32 %v1725, 0.6931472
        %v1727 = vmul.f32 %v1724, 0.01
        %v1728 = vmul.f32 %v1726, 0.01
        %v1729 = vrot.slane %v1727, 4
        %v1730 = vadd.f32 %v1727, %v1729
        %v1731 = vrot.slane %v1730, 2
        %v1732 = vadd.f32 %v1730, %v1731
        %v1733 = vrot.slane %v1732, 1
        %v1734 = vadd.f32 %v1732, %v1733
        %v1735 = vrot.slane %v1728, 4
        %v1736 = vadd.f32 %v1728, %v1735
        %v1737 = vrot.slane %v1736, 2
        %v1738 = vadd.f32 %v1736, %v1737
        %v1739 = vrot.slane %v1738, 1
        %v1740 = vadd.f32 %v1738, %v1739
        %v1741 = vsub.f32 %v775, -0.55
        %v1742 = vsub.f32 %v1227, -0.55
        %v1743 = vmul.f32 %v1741, %v1741
        %v1744 = vmul.f32 %v1742, %v1742
        %v1745 = vmul.f32 %v1743, -50.0
        %v1746 = vmul.f32 %v1744, -50.0
        %v1747 = vmul.f32 %v1745, 1.442695
        %v1748 = vpow.pop %v1747
        %v1749 = vmul.f32 %v1746, 1.442695
        %v1750 = vpow.pop %v1749
        %v1751 = vsel %vm1240, %v1748, 0.0
        %1752 = vadd.xlane.f32.xlu0 %v1751
        %v1753 = vpop.xlane.xlu0 %1752
        %v1754 = vsel %vm1240, %v1750, 0.0
        %1755 = vadd.xlane.f32.xlu0 %v1754
        %v1756 = vpop.xlane.xlu0 %1755
        %v1757 = vmax.f32 %v1753, 1e-10
        %v1758 = vmax.f32 %v1756, 1e-10
        %v1759 = vlog2.pop %v1757
        %v1760 = vmul.f32 %v1759, 0.6931472
        %v1761 = vlog2.pop %v1758
        %v1762 = vmul.f32 %v1761, 0.6931472
        %v1763 = vmul.f32 %v1760, 0.01
        %v1764 = vmul.f32 %v1762, 0.01
        %v1765 = vrot.slane %v1763, 4
        %v1766 = vadd.f32 %v1763, %v1765
        %v1767 = vrot.slane %v1766, 2
        %v1768 = vadd.f32 %v1766, %v1767
        %v1769 = vrot.slane %v1768, 1
        %v1770 = vadd.f32 %v1768, %v1769
        %v1771 = vrot.slane %v1764, 4
        %v1772 = vadd.f32 %v1764, %v1771
        %v1773 = vrot.slane %v1772, 2
        %v1774 = vadd.f32 %v1772, %v1773
        %v1775 = vrot.slane %v1774, 1
        %v1776 = vadd.f32 %v1774, %v1775
        %v1777 = vmul.f32 %v1748, %v1270
        %v1778 = vmul.f32 %v1750, %v1272
        %v1779 = vmul.f32 %v1777, 0.0024787523
        %v1780 = vmul.f32 %v1778, 0.0024787523
        %v1781 = vsel %vm1240, %v1779, 0.0
        %1782 = vadd.xlane.f32.xlu0 %v1781
        %v1783 = vpop.xlane.xlu0 %1782
        %v1784 = vsel %vm1240, %v1780, 0.0
        %1785 = vadd.xlane.f32.xlu0 %v1784
        %v1786 = vpop.xlane.xlu0 %1785
        %v1787 = vmax.f32 %v1783, 1e-10
        %v1788 = vmax.f32 %v1786, 1e-10
        %v1789 = vlog2.pop %v1787
        %v1790 = vmul.f32 %v1789, 0.6931472
        %v1791 = vlog2.pop %v1788
        %v1792 = vmul.f32 %v1791, 0.6931472
        %v1793 = vmul.f32 %v1790, 0.01
        %v1794 = vmul.f32 %v1792, 0.01
        %v1795 = vrot.slane %v1793, 4
        %v1796 = vadd.f32 %v1793, %v1795
        %v1797 = vrot.slane %v1796, 2
        %v1798 = vadd.f32 %v1796, %v1797
        %v1799 = vrot.slane %v1798, 1
        %v1800 = vadd.f32 %v1798, %v1799
        %v1801 = vrot.slane %v1794, 4
        %v1802 = vadd.f32 %v1794, %v1801
        %v1803 = vrot.slane %v1802, 2
        %v1804 = vadd.f32 %v1802, %v1803
        %v1805 = vrot.slane %v1804, 1
        %v1806 = vadd.f32 %v1804, %v1805
        %v1807 = vmul.f32 %v1779, %v1270
        %v1808 = vmul.f32 %v1780, %v1272
        %v1809 = vmul.f32 %v1807, 0.000911882
        %v1810 = vmul.f32 %v1808, 0.000911882
        %v1811 = vsel %vm1240, %v1809, 0.0
        %1812 = vadd.xlane.f32.xlu0 %v1811
        %v1813 = vpop.xlane.xlu0 %1812
        %v1814 = vsel %vm1240, %v1810, 0.0
        %1815 = vadd.xlane.f32.xlu0 %v1814
        %v1816 = vpop.xlane.xlu0 %1815
        %v1817 = vmax.f32 %v1813, 1e-10
        %v1818 = vmax.f32 %v1816, 1e-10
        %v1819 = vlog2.pop %v1817
        %v1820 = vmul.f32 %v1819, 0.6931472
        %v1821 = vlog2.pop %v1818
        %v1822 = vmul.f32 %v1821, 0.6931472
        %v1823 = vmul.f32 %v1820, 0.01
        %v1824 = vmul.f32 %v1822, 0.01
        %v1825 = vrot.slane %v1823, 4
        %v1826 = vadd.f32 %v1823, %v1825
        %v1827 = vrot.slane %v1826, 2
        %v1828 = vadd.f32 %v1826, %v1827
        %v1829 = vrot.slane %v1828, 1
        %v1830 = vadd.f32 %v1828, %v1829
        %v1831 = vrot.slane %v1824, 4
        %v1832 = vadd.f32 %v1824, %v1831
        %v1833 = vrot.slane %v1832, 2
        %v1834 = vadd.f32 %v1832, %v1833
        %v1835 = vrot.slane %v1834, 1
        %v1836 = vadd.f32 %v1834, %v1835
        %v1837 = vmul.f32 %v1809, %v1270
        %v1838 = vmul.f32 %v1810, %v1272
        %v1839 = vmul.f32 %v1837, 0.00033546262
        %v1840 = vmul.f32 %v1838, 0.00033546262
        %v1841 = vsel %vm1240, %v1839, 0.0
        %1842 = vadd.xlane.f32.xlu0 %v1841
        %v1843 = vpop.xlane.xlu0 %1842
        %v1844 = vsel %vm1240, %v1840, 0.0
        %1845 = vadd.xlane.f32.xlu0 %v1844
        %v1846 = vpop.xlane.xlu0 %1845
        %v1847 = vmax.f32 %v1843, 1e-10
        %v1848 = vmax.f32 %v1846, 1e-10
        %v1849 = vlog2.pop %v1847
        %v1850 = vmul.f32 %v1849, 0.6931472
        %v1851 = vlog2.pop %v1848
        %v1852 = vmul.f32 %v1851, 0.6931472
        %v1853 = vmul.f32 %v1850, 0.01
        %v1854 = vmul.f32 %v1852, 0.01
        %v1855 = vrot.slane %v1853, 4
        %v1856 = vadd.f32 %v1853, %v1855
        %v1857 = vrot.slane %v1856, 2
        %v1858 = vadd.f32 %v1856, %v1857
        %v1859 = vrot.slane %v1858, 1
        %v1860 = vadd.f32 %v1858, %v1859
        %v1861 = vrot.slane %v1854, 4
        %v1862 = vadd.f32 %v1854, %v1861
        %v1863 = vrot.slane %v1862, 2
        %v1864 = vadd.f32 %v1862, %v1863
        %v1865 = vrot.slane %v1864, 1
        %v1866 = vadd.f32 %v1864, %v1865
        %v1867 = vmul.f32 %v1839, %v1270
        %v1868 = vmul.f32 %v1840, %v1272
        %v1869 = vmul.f32 %v1867, 0.0001234098
        %v1870 = vmul.f32 %v1868, 0.0001234098
        %v1871 = vsel %vm1240, %v1869, 0.0
        %1872 = vadd.xlane.f32.xlu0 %v1871
        %v1873 = vpop.xlane.xlu0 %1872
        %v1874 = vsel %vm1240, %v1870, 0.0
        %1875 = vadd.xlane.f32.xlu0 %v1874
        %v1876 = vpop.xlane.xlu0 %1875
        %v1877 = vmax.f32 %v1873, 1e-10
        %v1878 = vmax.f32 %v1876, 1e-10
        %v1879 = vlog2.pop %v1877
        %v1880 = vmul.f32 %v1879, 0.6931472
        %v1881 = vlog2.pop %v1878
        %v1882 = vmul.f32 %v1881, 0.6931472
        %v1883 = vmul.f32 %v1880, 0.01
        %v1884 = vmul.f32 %v1882, 0.01
        %v1885 = vrot.slane %v1883, 4
        %v1886 = vadd.f32 %v1883, %v1885
        %v1887 = vrot.slane %v1886, 2
        %v1888 = vadd.f32 %v1886, %v1887
        %v1889 = vrot.slane %v1888, 1
        %v1890 = vadd.f32 %v1888, %v1889
        %v1891 = vrot.slane %v1884, 4
        %v1892 = vadd.f32 %v1884, %v1891
        %v1893 = vrot.slane %v1892, 2
        %v1894 = vadd.f32 %v1892, %v1893
        %v1895 = vrot.slane %v1894, 1
        %v1896 = vadd.f32 %v1894, %v1895
        %vm1897 = vcmask 7168
        %v1898 = vsel %vm1897, %v1260, %v1302
        %v1899 = vsel %vm1897, %v1266, %v1308
        %vm1900 = vcmask 15360
        %v1901 = vsel %vm1900, %v1898, %v1332
        %v1902 = vsel %vm1900, %v1899, %v1338
        %vm1903 = vcmask 23552
        %v1904 = vsel %vm1903, %v1901, %v1362
        %v1905 = vsel %vm1903, %v1902, %v1368
        %vm1906 = vcmask 31744
        %v1907 = vsel %vm1906, %v1904, %v1392
        %v1908 = vsel %vm1906, %v1905, %v1398
        %vm1909 = vcmask 39936
        %v1910 = vsel %vm1909, %v1907, %v1422
        %v1911 = vsel %vm1909, %v1908, %v1428
        %vm1912 = vcmask 48128
        %v1913 = vsel %vm1912, %v1910, %v1458
        %v1914 = vsel %vm1912, %v1911, %v1464
        %vm1915 = vcmask 56320
        %v1916 = vsel %vm1915, %v1913, %v1488
        %v1917 = vsel %vm1915, %v1914, %v1494
        %v1918 = vsel %vm1240, %v1916, %v1518
        %v1919 = vsel %vm1240, %v1917, %v1524
        %vm1920 = vcmask 72704
        %v1921 = vsel %vm1920, %v1918, %v1548
        %v1922 = vsel %vm1920, %v1919, %v1554
        %vm1923 = vcmask 80896
        %v1924 = vsel %vm1923, %v1921, %v1578
        %v1925 = vsel %vm1923, %v1922, %v1584
        %vm1926 = vcmask 89088
        %v1927 = vsel %vm1926, %v1924, %v1614
        %v1928 = vsel %vm1926, %v1925, %v1620
        %vm1929 = vcmask 97280
        %v1930 = vsel %vm1929, %v1927, %v1644
        %v1931 = vsel %vm1929, %v1928, %v1650
        %vm1932 = vcmask 105472
        %v1933 = vsel %vm1932, %v1930, %v1674
        %v1934 = vsel %vm1932, %v1931, %v1680
        %vm1935 = vcmask 113664
        %v1936 = vsel %vm1935, %v1933, %v1704
        %v1937 = vsel %vm1935, %v1934, %v1710
        %vm1938 = vcmask 121856
        %v1939 = vsel %vm1938, %v1936, %v1734
        %v1940 = vsel %vm1938, %v1937, %v1740
        %v1941 = vsel %vm1897, %v1770, %v1800
        %v1942 = vsel %vm1897, %v1776, %v1806
        %v1943 = vsel %vm1900, %v1941, %v1830
        %v1944 = vsel %vm1900, %v1942, %v1836
        %v1945 = vsel %vm1903, %v1943, %v1860
        %v1946 = vsel %vm1903, %v1944, %v1866
        %v1947 = vsel %vm1906, %v1945, %v1890
        %v1948 = vsel %vm1906, %v1946, %v1896
        %v1949 = vsel %vm1909, %v1947, 0.0
        %v1950 = vsel %vm1909, %v1948, 0.0
        %1953 = vrot.lane.b32.xlu0 %v1949, 16
        %v1954 = vpop.permute.xlu0 %1953
        %1955 = vrot.lane.b32.xlu0 %v1950, 16
        %v1956 = vpop.permute.xlu0 %1955
        %vm1959 = vcmask 130048
        %v1960 = vsel %vm1959, %v1939, %v1954
        %v1961 = vsel %vm1959, %v1940, %v1956
        %1962 = vst [vmem:[%s239] sm:$0x1] %v1960
        %1963 = vst [vmem:[%s239 + $0x1] sm:$0x1] %v1961
        %s1964 = sand.u32 %s130, 1
        %s1965 = scalar_lea.sflag [#allocation3], %s1964
        %s1966 = sand.u32 %s130, 1
        %s1967 = smul.addr %s1966, 2
        %s1968 = scalar_lea.vmem [#allocation2], %s1967
        // Predicated region
        $region37: #{tpu_custom_call.1} parent=35 // pred_check
          %p1969 = pneg %p140
        $region38: #{tpu_custom_call.1} parent=35 // pred_check_branch
          %1971 = sbr.rel (%p1969) target = $region40
        $region39: #{tpu_custom_call.1} parent=35 // pred_region
          %s1972 = smul.u32 2, %s18
          %s1974 = ssub.s32 32, 32
          %1975 = vsyncadd %s1965, %s1974
          %s1976 = smul.addr %s1972, 16
          %s1977 = scalar_lea.hbm %s4, %s1976
          %s1978 = sshll.u32 %s1968, 4
          %s1979 = int_to_ptr.vmem [resolvable:$true] %s1978
          %1984 = dma.vmem_to_hbm [thread:$0]  %s1979, 32, %s1977, %s1965, 16, 16, 1
        $region40: #{tpu_custom_call.1} parent=35 // pred_fallthru
          _
      $region36: #{tpu_custom_call.1} parent=5 // pred_fallthru
        _
      %p1985 = scmp.le.s32.totalorder 2, %s13
      // Predicated region
      $region41: #{tpu_custom_call.1} parent=5 // pred_check
        %p1986 = pneg %p1985
      $region42: #{tpu_custom_call.1} parent=5 // pred_check_branch
        %1988 = sbr.rel (%p1986) target = $region44
      $region43: #{tpu_custom_call.1} parent=5 // pred_region
        %s1989 = ssub.s32 %s13, 2
        // Predicated region
        $region45: #{tpu_custom_call.1} parent=43 // pred_check
          %p1990 = pneg %p146
        $region46: #{tpu_custom_call.1} parent=43 // pred_check_branch
          %1992 = sbr.rel (%p1990) target = $region48
        $region47: #{tpu_custom_call.1} parent=43 // pred_region
          %s1993 = sand.u32 %s131, 1
          %s1994 = scalar_lea.sflag [#allocation3], %s1993
          %s1995 = sand.u32 %s131, 1
          %s1996 = smul.addr %s1995, 2
          %s1997 = scalar_lea.vmem [#allocation2], %s1996
          %1998 = dma.done %s1994, 32
        $region48: #{tpu_custom_call.1} parent=43 // pred_fallthru
          _
      $region44: #{tpu_custom_call.1} parent=5 // pred_fallthru
        _
    $region6: #{tpu_custom_call.1} parent=1 // loop_footer
      %s17 = sadd.s32 1, %s13
    $region7: #{tpu_custom_call.1} parent=1 // loop_footer_branch
      %12 = sbr.rel target = $region3
    $region8: #{tpu_custom_call.1} parent=1 // loop_exit
      _
    %1999 = vsyncpa [#allocation3], 1
    %s2000 = scalar_lea.sflag [#allocation3], 1
    %2001 = vsyncpa %s2000, 1

</llo_original>
